<compile_context>
chip_gen: v6e
topology: v6e:2x2x1
jax: 0.10.0
libtpu: 0.0.40
codegen_flags: <defaults>
</compile_context>

<pallas_src>
import jax
import jax.numpy as jnp
from jax.experimental import pallas as pl
from jax.experimental.pallas import tpu as pltpu


# ---------------------------------------------------------------------------
# Kernels
# ---------------------------------------------------------------------------

def puremf_fused_kernel(uidx_ref, iidx_ref, utab_ref, itab_ref, o_ref):
    """Fused gather + dot + sigmoid.  Batch lives on the lane axis.

    uidx_ref, iidx_ref : (1, TB) int32  batch tile of row indices (VMEM)
    utab_ref           : (D, Nu) f32    full user table, (D, N) layout, VMEM-resident
    itab_ref           : (D, Ni) f32    full item table, VMEM-resident
    o_ref              : (1, TB) f32    lane-dense scores tile
    """
    nu = utab_ref.shape[1]
    ni = itab_ref.shape[1]
    tb = uidx_ref.shape[1]

    # Exact in-VMEM row gather expressed as a one-hot matmul (always lowers in
    # Mosaic).  HIGHEST precision makes the f32 MXU passes reproduce the table
    # rows exactly, so results match a true gather to f32 rounding.
    oh_u = (jax.lax.broadcasted_iota(jnp.int32, (nu, tb), 0)
            == uidx_ref[...]).astype(jnp.float32)                    # (Nu, TB)
    oh_i = (jax.lax.broadcasted_iota(jnp.int32, (ni, tb), 0)
            == iidx_ref[...]).astype(jnp.float32)                    # (Ni, TB)

    u_emb = jnp.dot(utab_ref[...], oh_u,
                    preferred_element_type=jnp.float32,
                    precision=jax.lax.Precision.HIGHEST)             # (D, TB)
    i_emb = jnp.dot(itab_ref[...], oh_i,
                    preferred_element_type=jnp.float32,
                    precision=jax.lax.Precision.HIGHEST)             # (D, TB)

    s = jnp.sum(u_emb * i_emb, axis=0, keepdims=True)                # (1, TB) sublane reduce
    o_ref[...] = 1.0 / (1.0 + jnp.exp(-s))                           # sigmoid (EUP exp + VPU)


def puremf_stream_kernel(u_ref, i_ref, o_ref):
    """Streaming fallback (tables too large for VMEM): pre-gathered embeddings
    arrive already in batch-on-lanes (D, TB) layout; just multiply-reduce."""
    prod = u_ref[...].astype(jnp.float32) * i_ref[...].astype(jnp.float32)
    s = jnp.sum(prod, axis=0, keepdims=True)                         # (1, TB)
    o_ref[...] = 1.0 / (1.0 + jnp.exp(-s))


# ---------------------------------------------------------------------------
# Tiling helpers
# ---------------------------------------------------------------------------

def _cdiv(a, b):
    return (a + b - 1) // b


def _round128(x):
    return ((int(x) + 127) // 128) * 128


def _pick_batch_tile(batch, bytes_per_batch_elem, vmem_budget_bytes, tb_ceiling):
    """Lane-dense batch tile: multiple of 128, as large as the VMEM budget
    allows (multi-MiB steps hide the ~0.35 us per-grid-step overhead), and
    capped so the grid keeps >= 2 tiles whenever the batch allows it (v7x
    megacore sharding of the "parallel" axis)."""
    cap = max(128, ((vmem_budget_bytes // max(bytes_per_batch_elem, 1)) // 128) * 128)
    tb = min(tb_ceiling, cap, _round128(batch))
    if _round128(batch) > 128 and _cdiv(batch, tb) < 2:
        tb = max(128, _round128(_cdiv(_round128(batch), 2)))
    num_tiles = _cdiv(batch, tb)
    return tb, num_tiles


# 48 MiB scoped VMEM: fits v7x's 64 MiB physical part with headroom, overrides
# v5e/v6e defaults (16 / 32 MiB), trivially under their 128 MiB physical VMEM.
_VMEM_LIMIT_BYTES = 48 * 1024 * 1024


# ---------------------------------------------------------------------------
# Forward wrapper (PureMF.forward equivalent)
# ---------------------------------------------------------------------------

def puremf_forward(user_emb_table, item_emb_table, users, items):
    """sigmoid(sum(user_table[users] * item_table[items], axis=1)) -> (B,)."""
    users = users.astype(jnp.int32)
    items = items.astype(jnp.int32)
    B = int(users.shape[0])
    Nu, D = user_emb_table.shape
    Ni = item_emb_table.shape[0]

    compiler_params = pltpu.CompilerParams(
        dimension_semantics=("parallel",),        # shard batch tiles over v7x's 2 TCs
        vmem_limit_bytes=_VMEM_LIMIT_BYTES,
    )

    # ---------------- Fused path: tables resident in VMEM, gather in-kernel --
    tables_bytes = (Nu + Ni) * D * 4
    if tables_bytes <= (2 << 20) and (Nu + Ni) <= 4096:
        # per-batch-element in-kernel footprint: one-hot rows + both embeddings
        per_elem_bytes = (Nu + Ni + 2 * D) * 4
        TB, num_tiles = _pick_batch_tile(B, per_elem_bytes, 12 << 20, 8192)
        B_pad = num_tiles * TB

        users_p = jnp.pad(users, (0, B_pad - B)).reshape(1, B_pad)   # pad -> row 0 (valid)
        items_p = jnp.pad(items, (0, B_pad - B)).reshape(1, B_pad)
        utab_t = user_emb_table.astype(jnp.float32).T                # (D, Nu), tiny
        itab_t = item_emb_table.astype(jnp.float32).T                # (D, Ni), tiny

        out = pl.pallas_call(
            puremf_fused_kernel,
            out_shape=jax.ShapeDtypeStruct((1, B_pad), jnp.float32),
            grid=(num_tiles,),
            in_specs=[
                pl.BlockSpec((1, TB), lambda i: (0, i)),     # user index tile
                pl.BlockSpec((1, TB), lambda i: (0, i)),     # item index tile
                pl.BlockSpec((D, Nu), lambda i: (0, 0)),     # full user table (VMEM-resident)
                pl.BlockSpec((D, Ni), lambda i: (0, 0)),     # full item table (VMEM-resident)
            ],
            out_specs=pl.BlockSpec((1, TB), lambda i: (0, i)),       # lane-dense store
            compiler_params=compiler_params,
        )(users_p, items_p, utab_t, itab_t)
        return out[0, :B]

    # ---------------- Streaming fallback: production-size tables -------------
    # Gather columns from (D, N)-layout tables so activations land directly in
    # batch-on-lanes layout (no per-call activation transpose), then stream
    # multi-MiB tiles through the mem-bound kernel.
    # TODO(synk): in a real deployment store the tables in (D, N) layout so the
    # per-call table transpose below disappears as well.
    TB, num_tiles = _pick_batch_tile(B, D * 4, 6 << 20, 32768)
    B_pad = num_tiles * TB
    users_p = jnp.pad(users, (0, B_pad - B))
    items_p = jnp.pad(items, (0, B_pad - B))
    users_emb_t = user_emb_table.T[:, users_p]                       # (D, B_pad)
    items_emb_t = item_emb_table.T[:, items_p]                       # (D, B_pad)

    out = pl.pallas_call(
        puremf_stream_kernel,
        out_shape=jax.ShapeDtypeStruct((1, B_pad), jnp.float32),
        grid=(num_tiles,),
        in_specs=[
            pl.BlockSpec((D, TB), lambda i: (0, i)),
            pl.BlockSpec((D, TB), lambda i: (0, i)),
        ],
        out_specs=pl.BlockSpec((1, TB), lambda i: (0, i)),
        compiler_params=compiler_params,
    )(users_emb_t, items_emb_t)
    return out[0, :B]


# ---------------------------------------------------------------------------
# Demo / self-test
# ---------------------------------------------------------------------------

if __name__ == "__main__":
    # Deterministic synthetic "PureMF" parameters: N(0,1) init as in the module.
    num_users, num_items, latent_dim = 64, 128, 32
    batch = 8

    key = jax.random.PRNGKey(0)
    k_u, k_i, k_uid, k_iid = jax.random.split(key, 4)
    user_table = jax.random.normal(k_u, (num_users, latent_dim), dtype=jnp.float32)
    item_table = jax.random.normal(k_i, (num_items, latent_dim), dtype=jnp.float32)

    users = jax.random.randint(k_uid, (batch,), 0, num_users, dtype=jnp.int32)
    items = jax.random.randint(k_iid, (batch,), 0, num_items, dtype=jnp.int32)

    scores = puremf_forward(user_table, item_table, users, items)
    scores = jax.block_until_ready(scores)

    # Pure-JAX reference check of the forward semantics.
    ref = jax.nn.sigmoid(
        jnp.sum(user_table[users] * item_table[items], axis=1)
    )
    assert scores.shape == (batch,)
    assert jnp.allclose(scores, ref, atol=1e-5, rtol=1e-5)

    print("KERNEL_OK")
</pallas_src>

<mosaic_0001>
module attributes {stable_mosaic.version = 11 : i64} {
  func.func @puremf_fused_kernel(%arg0: i32, %arg1: memref<1x128xi32, #tpu.memory_space<vmem>>, %arg2: memref<1x128xi32, #tpu.memory_space<vmem>>, %arg3: memref<32x64xf32, #tpu.memory_space<vmem>>, %arg4: memref<32x128xf32, #tpu.memory_space<vmem>>, %arg5: memref<1x128xf32, #tpu.memory_space<vmem>>) attributes {dimension_semantics = [#tpu.dimension_semantics<parallel>], iteration_bounds = array<i64: 1>, scalar_prefetch = 0 : i64, scratch_operands = 0 : i64, tpu.core_type = #tpu.core_type<tc>, window_params = [{transform_indices = @transform_0, window_bounds = array<i64: 1, 128>}, {transform_indices = @transform_1, window_bounds = array<i64: 1, 128>}, {pipeline_mode = #tpu.pipeline_mode<synchronous>, transform_indices = @transform_2, window_bounds = array<i64: 32, 64>}, {pipeline_mode = #tpu.pipeline_mode<synchronous>, transform_indices = @transform_3, window_bounds = array<i64: 32, 128>}, {transform_indices = @transform_4, window_bounds = array<i64: 1, 128>}]} {
    %0 = tpu.iota {dimensions = array<i32: 0>} : vector<64x128xi32>
    %c0 = arith.constant 0 : index
    %c0_0 = arith.constant 0 : index
    %1 = vector.load %arg1[%c0, %c0_0] : memref<1x128xi32, #tpu.memory_space<vmem>>, vector<1x128xi32>
    %2 = vector.broadcast %1 : vector<1x128xi32> to vector<64x128xi32>
    %3 = arith.cmpi eq, %0, %2 : vector<64x128xi32>
    %4 = arith.extui %3 : vector<64x128xi1> to vector<64x128xi32>
    %5 = arith.sitofp %4 : vector<64x128xi32> to vector<64x128xf32>
    %6 = tpu.iota {dimensions = array<i32: 0>} : vector<128x128xi32>
    %c0_1 = arith.constant 0 : index
    %c0_2 = arith.constant 0 : index
    %7 = vector.load %arg2[%c0_1, %c0_2] : memref<1x128xi32, #tpu.memory_space<vmem>>, vector<1x128xi32>
    %8 = vector.broadcast %7 : vector<1x128xi32> to vector<128x128xi32>
    %9 = arith.cmpi eq, %6, %8 : vector<128x128xi32>
    %10 = arith.extui %9 : vector<128x128xi1> to vector<128x128xi32>
    %11 = arith.sitofp %10 : vector<128x128xi32> to vector<128x128xf32>
    %c0_3 = arith.constant 0 : index
    %c0_4 = arith.constant 0 : index
    %12 = vector.load %arg3[%c0_3, %c0_4] : memref<32x64xf32, #tpu.memory_space<vmem>>, vector<32x64xf32>
    %cst = arith.constant dense<0.000000e+00> : vector<32x128xf32>
    %13 = tpu.matmul %12, %5, %cst {dimension_numbers = #tpu.dot_dimension_numbers<[1], [0], [0], [1], [0, 0, 1, 1], [], []>, precision = #tpu.contract_precision<fp32>} : vector<32x64xf32>, vector<64x128xf32>, vector<32x128xf32> -> vector<32x128xf32>
    %c0_5 = arith.constant 0 : index
    %c0_6 = arith.constant 0 : index
    %14 = vector.load %arg4[%c0_5, %c0_6] : memref<32x128xf32, #tpu.memory_space<vmem>>, vector<32x128xf32>
    %cst_7 = arith.constant dense<0.000000e+00> : vector<32x128xf32>
    %15 = tpu.matmul %14, %11, %cst_7 {dimension_numbers = #tpu.dot_dimension_numbers<[1], [0], [0], [1], [0, 0, 1, 1], [], []>, precision = #tpu.contract_precision<fp32>} : vector<32x128xf32>, vector<128x128xf32>, vector<32x128xf32> -> vector<32x128xf32>
    %16 = arith.mulf %13, %15 : vector<32x128xf32>
    %cst_8 = arith.constant dense<0.000000e+00> : vector<128xf32>
    %17 = vector.multi_reduction <add>, %16, %cst_8 [0] : vector<32x128xf32> to vector<128xf32>
    %18 = vector.shape_cast %17 : vector<128xf32> to vector<1x128xf32>
    %cst_9 = arith.constant 0.000000e+00 : f32
    %19 = vector.broadcast %cst_9 : f32 to vector<1x128xf32>
    %20 = arith.subf %19, %18 : vector<1x128xf32>
    %21 = math.exp %20 : vector<1x128xf32>
    %cst_10 = arith.constant 1.000000e+00 : f32
    %22 = vector.broadcast %cst_10 : f32 to vector<1x128xf32>
    %23 = arith.addf %22, %21 : vector<1x128xf32>
    %cst_11 = arith.constant 1.000000e+00 : f32
    %24 = vector.broadcast %cst_11 : f32 to vector<1x128xf32>
    %25 = arith.divf %24, %23 : vector<1x128xf32>
    %c0_12 = arith.constant 0 : index
    %c0_13 = arith.constant 0 : index
    %26 = vector.load %arg5[%c0_12, %c0_13] : memref<1x128xf32, #tpu.memory_space<vmem>>, vector<1x128xf32>
    tpu.vector_store %arg5[%c0_12, %c0_13], %25 {strides = array<i32>} : memref<1x128xf32, #tpu.memory_space<vmem>>, vector<1x128xf32>,
    return
  }
  func.func @transform_0(%arg0: i32) -> (i32, i32) {
    %c0_i32 = arith.constant 0 : i32
    %c0_i32_0 = arith.constant 0 : i32
    return %c0_i32, %arg0 : i32, i32
  }
  func.func @transform_1(%arg0: i32) -> (i32, i32) {
    %c0_i32 = arith.constant 0 : i32
    %c0_i32_0 = arith.constant 0 : i32
    return %c0_i32, %arg0 : i32, i32
  }
  func.func @transform_2(%arg0: i32) -> (i32, i32) {
    %c0_i32 = arith.constant 0 : i32
    %c0_i32_0 = arith.constant 0 : i32
    %c0_i32_1 = arith.constant 0 : i32
    return %c0_i32, %c0_i32_0 : i32, i32
  }
  func.func @transform_3(%arg0: i32) -> (i32, i32) {
    %c0_i32 = arith.constant 0 : i32
    %c0_i32_0 = arith.constant 0 : i32
    %c0_i32_1 = arith.constant 0 : i32
    return %c0_i32, %c0_i32_0 : i32, i32
  }
  func.func @transform_4(%arg0: i32) -> (i32, i32) {
    %c0_i32 = arith.constant 0 : i32
    %c0_i32_0 = arith.constant 0 : i32
    return %c0_i32, %arg0 : i32, i32
  }
}

</mosaic_0001>

<llo_original>
// kernel: tpu_custom_call.1
$region0: #{tpu_custom_call.1}
  #allocation0 [shape = 'u32[]', space=smem, size = 0x4, offset = 0x4, fixed_abs, tag = 'smem constant byte address 0x4 - core index']
  #allocation1 [shape = 'u32[144,128]{1,0:T(1,128)}', space=vmem, size = 0x12000, scoped, tag = 'internal scratch']
  %s0 = inlined_call_operand.hbm [shape: s32[1,128], index: 0, kind: input, shape index: {}]
  %s1 = inlined_call_operand.vmem [shape: s32[1,128], index: 1, kind: input, shape index: {}]
  %s2 = inlined_call_operand.hbm [shape: f32[32,64], index: 2, kind: input, shape index: {}]
  %s3 = inlined_call_operand.hbm [shape: f32[32,128], index: 3, kind: input, shape index: {}]
  %s4 = inlined_call_operand.hbm [shape: f32[1,128], index: 4, kind: output, shape index: {}]
  %s5 = sld [smem:[#allocation0]]
  $region38: #{tpu_custom_call.1} parent=0
    _
  %s7 = ssub.s32 1, %s5
  %s8 = scalar_select 0, %s7, %s5
  $region1: #{tpu_custom_call.1} parent=0
    #allocation2 [shape = 'u8[512]{0}', space=vmem, size = 0x400, scoped, tag = 'input window, operand 0, single buffered']
    #allocation3 [shape = 's32[1]{0}', space=sflag, size = 0x4, scoped, tag = 'scoped memory for tpu_custom_call.1']
    #allocation4 [shape = 's32[1]{0}', space=sflag, size = 0x4, scoped, tag = 'scoped memory for tpu_custom_call.1']
    #allocation5 [shape = 'u8[16384]{0}', space=vmem, size = 0x4000, scoped, tag = 'input window, operand 2, single buffered']
    #allocation6 [shape = 's32[1]{0}', space=sflag, size = 0x4, scoped, tag = 'scoped memory for tpu_custom_call.1']
    #allocation7 [shape = 'u8[16384]{0}', space=vmem, size = 0x4000, scoped, tag = 'input window, operand 3, single buffered']
    #allocation8 [shape = 'u8[512]{0}', space=vmem, size = 0x400, scoped, tag = 'output window, operand 0, single buffered']
    %9 = vsyncpa [#allocation3], 0
    %10 = vsyncpa [#allocation6], 0
    %11 = vsyncpa [#allocation4], 0
    // Predicated region
    $region2: #{tpu_custom_call.1} parent=1 // pred_check
      _
    $region3: #{tpu_custom_call.1} parent=1 // pred_check_branch
      %13 = sbr.rel (0) target = $region5
    $region4: #{tpu_custom_call.1} parent=1 // pred_region
      %s15 = ssub.s32 16, 16
      %16 = vsyncadd [#allocation3], %s15
      %s18 = sshll.u32 [#allocation2], 4
      %s19 = int_to_ptr.vmem [resolvable:$true] %s18
      %21 = dma.hbm_to_vmem [thread:$0]  %s0, 16, %s19, [#allocation3]
    $region5: #{tpu_custom_call.1} parent=1 // pred_fallthru
      _
    // Predicated region
    $region6: #{tpu_custom_call.1} parent=1 // pred_check
      _
    $region7: #{tpu_custom_call.1} parent=1 // pred_check_branch
      %23 = sbr.rel (0) target = $region9
    $region8: #{tpu_custom_call.1} parent=1 // pred_region
      _
    $region9: #{tpu_custom_call.1} parent=1 // pred_fallthru
      _
    // Predicated region
    $region10: #{tpu_custom_call.1} parent=1 // pred_check
      _
    $region11: #{tpu_custom_call.1} parent=1 // pred_check_branch
      %25 = sbr.rel (0) target = $region13
    $region12: #{tpu_custom_call.1} parent=1 // pred_region
      %s27 = ssub.s32 512, 512
      %28 = vsyncadd [#allocation6], %s27
      %s29 = sshll.u32 [#allocation5], 4
      %s30 = int_to_ptr.vmem [resolvable:$true] %s29
      %35 = dma.hbm_to_vmem [thread:$0]  %s2, 512, %s30, [#allocation6], 128, 128, 8
    $region13: #{tpu_custom_call.1} parent=1 // pred_fallthru
      _
    // Predicated region
    $region14: #{tpu_custom_call.1} parent=1 // pred_check
      _
    $region15: #{tpu_custom_call.1} parent=1 // pred_check_branch
      %37 = sbr.rel (0) target = $region17
    $region16: #{tpu_custom_call.1} parent=1 // pred_region
      %s39 = ssub.s32 512, 512
      %40 = vsyncadd [#allocation6], %s39
      %s41 = sshll.u32 [#allocation7], 4
      %s42 = int_to_ptr.vmem [resolvable:$true] %s41
      %47 = dma.hbm_to_vmem [thread:$0]  %s3, 512, %s42, [#allocation6], 128, 128, 8
    $region17: #{tpu_custom_call.1} parent=1 // pred_fallthru
      _
    // Predicated region
    $region18: #{tpu_custom_call.1} parent=1 // pred_check
      _
    $region19: #{tpu_custom_call.1} parent=1 // pred_check_branch
      %49 = sbr.rel (0) target = $region21
    $region20: #{tpu_custom_call.1} parent=1 // pred_region
      %50 = dma.done [#allocation3], 16
    $region21: #{tpu_custom_call.1} parent=1 // pred_fallthru
      _
    // Predicated region
    $region22: #{tpu_custom_call.1} parent=1 // pred_check
      _
    $region23: #{tpu_custom_call.1} parent=1 // pred_check_branch
      %52 = sbr.rel (0) target = $region25
    $region24: #{tpu_custom_call.1} parent=1 // pred_region
      %53 = dma.done [#allocation6], 512
    $region25: #{tpu_custom_call.1} parent=1 // pred_fallthru
      _
    // Predicated region
    $region26: #{tpu_custom_call.1} parent=1 // pred_check
      _
    $region27: #{tpu_custom_call.1} parent=1 // pred_check_branch
      %55 = sbr.rel (0) target = $region29
    $region28: #{tpu_custom_call.1} parent=1 // pred_region
      %56 = dma.done [#allocation6], 512
    $region29: #{tpu_custom_call.1} parent=1 // pred_fallthru
      _
    %v57 = vlaneseq
    %v58 = vshrl.u32 %v57, 7
    %v59 = vadd.s32 %v58, 8
    %v60 = vadd.s32 %v58, 16
    %v61 = vadd.s32 %v58, 24
    %v62 = vadd.s32 %v58, 32
    %v63 = vadd.s32 %v58, 40
    %v64 = vadd.s32 %v58, 48
    %v65 = vadd.s32 %v58, 56
    %v66 = vld [vmem:[#allocation2] sm:$0x1]
    %v67 = vlaneseq
    %v68 = vshrl.u32 %v67, 7
    %v69 = vsub.s32 0, %v68
    %v70 = vrot.slane %v66, %v69
    %vm71 = vcmp.eq.s32.totalorder %v58, %v70
    %vm72 = vcmp.eq.s32.totalorder %v59, %v70
    %vm73 = vcmp.eq.s32.totalorder %v60, %v70
    %vm74 = vcmp.eq.s32.totalorder %v61, %v70
    %vm75 = vcmp.eq.s32.totalorder %v62, %v70
    %vm76 = vcmp.eq.s32.totalorder %v63, %v70
    %vm77 = vcmp.eq.s32.totalorder %v64, %v70
    %vm78 = vcmp.eq.s32.totalorder %v65, %v70
    %v79 = vsel %vm71, 1, 0
    %v80 = vsel %vm72, 1, 0
    %v81 = vsel %vm73, 1, 0
    %v82 = vsel %vm74, 1, 0
    %v83 = vsel %vm75, 1, 0
    %v84 = vsel %vm76, 1, 0
    %v85 = vsel %vm77, 1, 0
    %v86 = vsel %vm78, 1, 0
    %v87 = vcvt.s32.f32 %v79
    %v88 = vcvt.s32.f32 %v80
    %v89 = vcvt.s32.f32 %v81
    %v90 = vcvt.s32.f32 %v82
    %v91 = vcvt.s32.f32 %v83
    %v92 = vcvt.s32.f32 %v84
    %v93 = vcvt.s32.f32 %v85
    %v94 = vcvt.s32.f32 %v86
    %v95 = vadd.s32 %v58, 64
    %v96 = vadd.s32 %v58, 72
    %v97 = vadd.s32 %v58, 80
    %v98 = vadd.s32 %v58, 88
    %v99 = vadd.s32 %v58, 96
    %v100 = vadd.s32 %v58, 104
    %v101 = vadd.s32 %v58, 112
    %v102 = vadd.s32 %v58, 120
    %v103 = vld [vmem:[%s1] sm:$0x1]
    %v104 = vlaneseq
    %v105 = vshrl.u32 %v104, 7
    %v106 = vsub.s32 0, %v105
    %v107 = vrot.slane %v103, %v106
    %vm108 = vcmp.eq.s32.totalorder %v58, %v107
    %vm109 = vcmp.eq.s32.totalorder %v59, %v107
    %vm110 = vcmp.eq.s32.totalorder %v60, %v107
    %vm111 = vcmp.eq.s32.totalorder %v61, %v107
    %vm112 = vcmp.eq.s32.totalorder %v62, %v107
    %vm113 = vcmp.eq.s32.totalorder %v63, %v107
    %vm114 = vcmp.eq.s32.totalorder %v64, %v107
    %vm115 = vcmp.eq.s32.totalorder %v65, %v107
    %vm116 = vcmp.eq.s32.totalorder %v95, %v107
    %vm117 = vcmp.eq.s32.totalorder %v96, %v107
    %vm118 = vcmp.eq.s32.totalorder %v97, %v107
    %vm119 = vcmp.eq.s32.totalorder %v98, %v107
    %vm120 = vcmp.eq.s32.totalorder %v99, %v107
    %vm121 = vcmp.eq.s32.totalorder %v100, %v107
    %vm122 = vcmp.eq.s32.totalorder %v101, %v107
    %vm123 = vcmp.eq.s32.totalorder %v102, %v107
    %v124 = vsel %vm108, 1, 0
    %v125 = vsel %vm109, 1, 0
    %v126 = vsel %vm110, 1, 0
    %v127 = vsel %vm111, 1, 0
    %v128 = vsel %vm112, 1, 0
    %v129 = vsel %vm113, 1, 0
    %v130 = vsel %vm114, 1, 0
    %v131 = vsel %vm115, 1, 0
    %v132 = vsel %vm116, 1, 0
    %v133 = vsel %vm117, 1, 0
    %v134 = vsel %vm118, 1, 0
    %v135 = vsel %vm119, 1, 0
    %v136 = vsel %vm120, 1, 0
    %v137 = vsel %vm121, 1, 0
    %v138 = vsel %vm122, 1, 0
    %v139 = vsel %vm123, 1, 0
    %v140 = vcvt.s32.f32 %v124
    %v141 = vcvt.s32.f32 %v125
    %v142 = vcvt.s32.f32 %v126
    %v143 = vcvt.s32.f32 %v127
    %v144 = vcvt.s32.f32 %v128
    %v145 = vcvt.s32.f32 %v129
    %v146 = vcvt.s32.f32 %v130
    %v147 = vcvt.s32.f32 %v131
    %v148 = vcvt.s32.f32 %v132
    %v149 = vcvt.s32.f32 %v133
    %v150 = vcvt.s32.f32 %v134
    %v151 = vcvt.s32.f32 %v135
    %v152 = vcvt.s32.f32 %v136
    %v153 = vcvt.s32.f32 %v137
    %v154 = vcvt.s32.f32 %v138
    %v155 = vcvt.s32.f32 %v139
    %v156 = vld [vmem:[#allocation5] sm:$0xff]
    %v157 = vld [vmem:[#allocation5 + $0x8] sm:$0xff]
    %v158 = vld [vmem:[#allocation5 + $0x10] sm:$0xff]
    %v159 = vld [vmem:[#allocation5 + $0x18] sm:$0xff]
    %vm160 = vcmask 523264
    %v162 = vsel %vm160, %v156, 0
    %v165 = vsel %vm160, %v157, 0
    %v168 = vsel %vm160, %v158, 0
    %v171 = vsel %vm160, %v159, 0
    %173 = vmatprep.subr.mxu0 0.0
    %174 = vmatpush1.msra.mxu0 0.0
    %175 = vmatprep.subr.mxu0 0.0
    %176 = vmatpush1.msra.mxu0 0.0
    %177 = vmatprep.subr.mxu0 0.0
    %178 = vmatpush1.msra.mxu0 0.0
    %179 = vmatprep.subr.mxu0 0.0
    %180 = vmatpush1.msra.mxu0 0.0
    %181 = vmatprep.subr.mxu0 0.0
    %182 = vmatpush1.msra.mxu0 0.0
    %183 = vmatprep.subr.mxu0 0.0
    %184 = vmatpush1.msra.mxu0 0.0
    %185 = vmatprep.subr.mxu0 0.0
    %186 = vmatpush1.msra.mxu0 0.0
    %187 = vmatprep.subr.mxu0 0.0
    %188 = vmatpush1.msra.mxu0 0.0
    %189 = vmatprep.subr.mxu0 0.0
    %v190 = vand.u32 %v94, 4294901760
    %191 = vmatpush1.msra.mxu0 %v190
    %192 = vmatprep.subr.mxu0 0.0
    %v193 = vand.u32 %v93, 4294901760
    %194 = vmatpush1.msra.mxu0 %v193
    %195 = vmatprep.subr.mxu0 0.0
    %v196 = vand.u32 %v92, 4294901760
    %197 = vmatpush1.msra.mxu0 %v196
    %198 = vmatprep.subr.mxu0 0.0
    %v199 = vand.u32 %v91, 4294901760
    %200 = vmatpush1.msra.mxu0 %v199
    %201 = vmatprep.subr.mxu0 0.0
    %v202 = vand.u32 %v90, 4294901760
    %203 = vmatpush1.msra.mxu0 %v202
    %204 = vmatprep.subr.mxu0 0.0
    %v205 = vand.u32 %v89, 4294901760
    %206 = vmatpush1.msra.mxu0 %v205
    %207 = vmatprep.subr.mxu0 0.0
    %v208 = vand.u32 %v88, 4294901760
    %209 = vmatpush1.msra.mxu0 %v208
    %210 = vmatprep.subr.mxu0 0.0
    %v211 = vand.u32 %v87, 4294901760
    %212 = vmatpush1.msra.mxu0 %v211
    %213 = vmatprep.subr.mxu0 0.0
    %214 = vmatpush2.msra.mxu0 0.0
    %215 = vmatprep.subr.mxu0 0.0
    %216 = vmatpush2.msra.mxu0 0.0
    %217 = vmatprep.subr.mxu0 0.0
    %218 = vmatpush2.msra.mxu0 0.0
    %219 = vmatprep.subr.mxu0 0.0
    %220 = vmatpush2.msra.mxu0 0.0
    %221 = vmatprep.subr.mxu0 0.0
    %222 = vmatpush2.msra.mxu0 0.0
    %223 = vmatprep.subr.mxu0 0.0
    %224 = vmatpush2.msra.mxu0 0.0
    %225 = vmatprep.subr.mxu0 0.0
    %226 = vmatpush2.msra.mxu0 0.0
    %227 = vmatprep.subr.mxu0 0.0
    %228 = vmatpush2.msra.mxu0 0.0
    %229 = vmatprep.subr.mxu0 0.0
    %230 = vmatpush2.msra.mxu0 0.0
    %231 = vmatprep.subr.mxu0 0.0
    %232 = vmatpush2.msra.mxu0 0.0
    %233 = vmatprep.subr.mxu0 0.0
    %234 = vmatpush2.msra.mxu0 0.0
    %235 = vmatprep.subr.mxu0 0.0
    %236 = vmatpush2.msra.mxu0 0.0
    %237 = vmatprep.subr.mxu0 0.0
    %238 = vmatpush2.msra.mxu0 0.0
    %239 = vmatprep.subr.mxu0 0.0
    %240 = vmatpush2.msra.mxu0 0.0
    %241 = vmatprep.subr.mxu0 0.0
    %242 = vmatpush2.msra.mxu0 0.0
    %243 = vmatprep.subr.mxu0 0.0
    %244 = vmatpush2.msra.mxu0 0.0
    %245 = vmatprep.mubr.f32.mxu0 0.0
    %v246 = vand.u32 %v162, 4294901760
    %v247 = vsub.f32 %v162, %v246
    %v248 = vand.u32 %v247, 4294901760
    %v249 = vsub.f32 %v247, %v248
    %v250 = vand.u32 %v249, 4294901760
    %251 = vmatmul.mubr.f32.gmra.mxu0 %v250
    %v252 = vpop.f32.mrf.mxu0
    %v253 = vadd.f32 0.0, %v252
    %v254 = vpop.f32.mrf.mxu0
    %255 = vmatprep.mubr.f32.mxu0 0.0
    %v256 = vand.u32 %v165, 4294901760
    %v257 = vsub.f32 %v165, %v256
    %v258 = vand.u32 %v257, 4294901760
    %v259 = vsub.f32 %v257, %v258
    %v260 = vand.u32 %v259, 4294901760
    %261 = vmatmul.mubr.f32.gmra.mxu0 %v260
    %v262 = vpop.f32.mrf.mxu0
    %v263 = vadd.f32 0.0, %v262
    %v264 = vpop.f32.mrf.mxu0
    %265 = vmatprep.mubr.f32.mxu0 0.0
    %v266 = vand.u32 %v168, 4294901760
    %v267 = vsub.f32 %v168, %v266
    %v268 = vand.u32 %v267, 4294901760
    %v269 = vsub.f32 %v267, %v268
    %v270 = vand.u32 %v269, 4294901760
    %271 = vmatmul.mubr.f32.gmra.mxu0 %v270
    %v272 = vpop.f32.mrf.mxu0
    %v273 = vadd.f32 0.0, %v272
    %v274 = vpop.f32.mrf.mxu0
    %275 = vmatprep.mubr.f32.mxu0 0.0
    %v276 = vand.u32 %v171, 4294901760
    %v277 = vsub.f32 %v171, %v276
    %v278 = vand.u32 %v277, 4294901760
    %v279 = vsub.f32 %v277, %v278
    %v280 = vand.u32 %v279, 4294901760
    %281 = vmatmul.mubr.f32.gmra.mxu0 %v280
    %v282 = vpop.f32.mrf.mxu0
    %v283 = vadd.f32 0.0, %v282
    %v284 = vpop.f32.mrf.mxu0
    %285 = vdwg.mxu0
    %286 = vmatprep.subr.mxu0 0.0
    %287 = vmatpush1.msra.mxu0 0.0
    %288 = vmatprep.subr.mxu0 0.0
    %289 = vmatpush1.msra.mxu0 0.0
    %290 = vmatprep.subr.mxu0 0.0
    %291 = vmatpush1.msra.mxu0 0.0
    %292 = vmatprep.subr.mxu0 0.0
    %293 = vmatpush1.msra.mxu0 0.0
    %294 = vmatprep.subr.mxu0 0.0
    %295 = vmatpush1.msra.mxu0 0.0
    %296 = vmatprep.subr.mxu0 0.0
    %297 = vmatpush1.msra.mxu0 0.0
    %298 = vmatprep.subr.mxu0 0.0
    %299 = vmatpush1.msra.mxu0 0.0
    %300 = vmatprep.subr.mxu0 0.0
    %301 = vmatpush1.msra.mxu0 0.0
    %302 = vmatprep.subr.mxu0 0.0
    %v303 = vand.u32 %v94, 4294901760
    %v304 = vsub.f32 %v94, %v303
    %v305 = vand.u32 %v304, 4294901760
    %v306 = vsub.f32 %v304, %v305
    %v307 = vand.u32 %v306, 4294901760
    %308 = vmatpush1.msra.mxu0 %v307
    %309 = vmatprep.subr.mxu0 0.0
    %v310 = vand.u32 %v93, 4294901760
    %v311 = vsub.f32 %v93, %v310
    %v312 = vand.u32 %v311, 4294901760
    %v313 = vsub.f32 %v311, %v312
    %v314 = vand.u32 %v313, 4294901760
    %315 = vmatpush1.msra.mxu0 %v314
    %316 = vmatprep.subr.mxu0 0.0
    %v317 = vand.u32 %v92, 4294901760
    %v318 = vsub.f32 %v92, %v317
    %v319 = vand.u32 %v318, 4294901760
    %v320 = vsub.f32 %v318, %v319
    %v321 = vand.u32 %v320, 4294901760
    %322 = vmatpush1.msra.mxu0 %v321
    %323 = vmatprep.subr.mxu0 0.0
    %v324 = vand.u32 %v91, 4294901760
    %v325 = vsub.f32 %v91, %v324
    %v326 = vand.u32 %v325, 4294901760
    %v327 = vsub.f32 %v325, %v326
    %v328 = vand.u32 %v327, 4294901760
    %329 = vmatpush1.msra.mxu0 %v328
    %330 = vmatprep.subr.mxu0 0.0
    %v331 = vand.u32 %v90, 4294901760
    %v332 = vsub.f32 %v90, %v331
    %v333 = vand.u32 %v332, 4294901760
    %v334 = vsub.f32 %v332, %v333
    %v335 = vand.u32 %v334, 4294901760
    %336 = vmatpush1.msra.mxu0 %v335
    %337 = vmatprep.subr.mxu0 0.0
    %v338 = vand.u32 %v89, 4294901760
    %v339 = vsub.f32 %v89, %v338
    %v340 = vand.u32 %v339, 4294901760
    %v341 = vsub.f32 %v339, %v340
    %v342 = vand.u32 %v341, 4294901760
    %343 = vmatpush1.msra.mxu0 %v342
    %344 = vmatprep.subr.mxu0 0.0
    %v345 = vand.u32 %v88, 4294901760
    %v346 = vsub.f32 %v88, %v345
    %v347 = vand.u32 %v346, 4294901760
    %v348 = vsub.f32 %v346, %v347
    %v349 = vand.u32 %v348, 4294901760
    %350 = vmatpush1.msra.mxu0 %v349
    %351 = vmatprep.subr.mxu0 0.0
    %v352 = vand.u32 %v87, 4294901760
    %v353 = vsub.f32 %v87, %v352
    %v354 = vand.u32 %v353, 4294901760
    %v355 = vsub.f32 %v353, %v354
    %v356 = vand.u32 %v355, 4294901760
    %357 = vmatpush1.msra.mxu0 %v356
    %358 = vmatprep.subr.mxu0 0.0
    %359 = vmatpush2.msra.mxu0 0.0
    %360 = vmatprep.subr.mxu0 0.0
    %361 = vmatpush2.msra.mxu0 0.0
    %362 = vmatprep.subr.mxu0 0.0
    %363 = vmatpush2.msra.mxu0 0.0
    %364 = vmatprep.subr.mxu0 0.0
    %365 = vmatpush2.msra.mxu0 0.0
    %366 = vmatprep.subr.mxu0 0.0
    %367 = vmatpush2.msra.mxu0 0.0
    %368 = vmatprep.subr.mxu0 0.0
    %369 = vmatpush2.msra.mxu0 0.0
    %370 = vmatprep.subr.mxu0 0.0
    %371 = vmatpush2.msra.mxu0 0.0
    %372 = vmatprep.subr.mxu0 0.0
    %373 = vmatpush2.msra.mxu0 0.0
    %374 = vmatprep.subr.mxu0 0.0
    %375 = vmatpush2.msra.mxu0 0.0
    %376 = vmatprep.subr.mxu0 0.0
    %377 = vmatpush2.msra.mxu0 0.0
    %378 = vmatprep.subr.mxu0 0.0
    %379 = vmatpush2.msra.mxu0 0.0
    %380 = vmatprep.subr.mxu0 0.0
    %381 = vmatpush2.msra.mxu0 0.0
    %382 = vmatprep.subr.mxu0 0.0
    %383 = vmatpush2.msra.mxu0 0.0
    %384 = vmatprep.subr.mxu0 0.0
    %385 = vmatpush2.msra.mxu0 0.0
    %386 = vmatprep.subr.mxu0 0.0
    %387 = vmatpush2.msra.mxu0 0.0
    %388 = vmatprep.subr.mxu0 0.0
    %389 = vmatpush2.msra.mxu0 0.0
    %390 = vmatprep.mubr.f32.mxu0 0.0
    %v391 = vand.u32 %v162, 4294901760
    %392 = vmatmul.mubr.f32.gmra.mxu0 %v391
    %v393 = vpop.f32.mrf.mxu0
    %v394 = vadd.f32 %v253, %v393
    %v395 = vpop.f32.mrf.mxu0
    %396 = vmatprep.mubr.f32.mxu0 0.0
    %v397 = vand.u32 %v165, 4294901760
    %398 = vmatmul.mubr.f32.gmra.mxu0 %v397
    %v399 = vpop.f32.mrf.mxu0
    %v400 = vadd.f32 %v263, %v399
    %v401 = vpop.f32.mrf.mxu0
    %402 = vmatprep.mubr.f32.mxu0 0.0
    %v403 = vand.u32 %v168, 4294901760
    %404 = vmatmul.mubr.f32.gmra.mxu0 %v403
    %v405 = vpop.f32.mrf.mxu0
    %v406 = vadd.f32 %v273, %v405
    %v407 = vpop.f32.mrf.mxu0
    %408 = vmatprep.mubr.f32.mxu0 0.0
    %v409 = vand.u32 %v171, 4294901760
    %410 = vmatmul.mubr.f32.gmra.mxu0 %v409
    %v411 = vpop.f32.mrf.mxu0
    %v412 = vadd.f32 %v283, %v411
    %v413 = vpop.f32.mrf.mxu0
    %414 = vdwg.mxu0
    %415 = vmatprep.subr.mxu0 0.0
    %416 = vmatpush1.msra.mxu0 0.0
    %417 = vmatprep.subr.mxu0 0.0
    %418 = vmatpush1.msra.mxu0 0.0
    %419 = vmatprep.subr.mxu0 0.0
    %420 = vmatpush1.msra.mxu0 0.0
    %421 = vmatprep.subr.mxu0 0.0
    %422 = vmatpush1.msra.mxu0 0.0
    %423 = vmatprep.subr.mxu0 0.0
    %424 = vmatpush1.msra.mxu0 0.0
    %425 = vmatprep.subr.mxu0 0.0
    %426 = vmatpush1.msra.mxu0 0.0
    %427 = vmatprep.subr.mxu0 0.0
    %428 = vmatpush1.msra.mxu0 0.0
    %429 = vmatprep.subr.mxu0 0.0
    %430 = vmatpush1.msra.mxu0 0.0
    %431 = vmatprep.subr.mxu0 0.0
    %v432 = vand.u32 %v94, 4294901760
    %v433 = vsub.f32 %v94, %v432
    %434 = vmatpush1.msra.mxu0 %v433
    %435 = vmatprep.subr.mxu0 0.0
    %v436 = vand.u32 %v93, 4294901760
    %v437 = vsub.f32 %v93, %v436
    %438 = vmatpush1.msra.mxu0 %v437
    %439 = vmatprep.subr.mxu0 0.0
    %v440 = vand.u32 %v92, 4294901760
    %v441 = vsub.f32 %v92, %v440
    %442 = vmatpush1.msra.mxu0 %v441
    %443 = vmatprep.subr.mxu0 0.0
    %v444 = vand.u32 %v91, 4294901760
    %v445 = vsub.f32 %v91, %v444
    %446 = vmatpush1.msra.mxu0 %v445
    %447 = vmatprep.subr.mxu0 0.0
    %v448 = vand.u32 %v90, 4294901760
    %v449 = vsub.f32 %v90, %v448
    %450 = vmatpush1.msra.mxu0 %v449
    %451 = vmatprep.subr.mxu0 0.0
    %v452 = vand.u32 %v89, 4294901760
    %v453 = vsub.f32 %v89, %v452
    %454 = vmatpush1.msra.mxu0 %v453
    %455 = vmatprep.subr.mxu0 0.0
    %v456 = vand.u32 %v88, 4294901760
    %v457 = vsub.f32 %v88, %v456
    %458 = vmatpush1.msra.mxu0 %v457
    %459 = vmatprep.subr.mxu0 0.0
    %v460 = vand.u32 %v87, 4294901760
    %v461 = vsub.f32 %v87, %v460
    %462 = vmatpush1.msra.mxu0 %v461
    %463 = vmatprep.subr.mxu0 0.0
    %464 = vmatpush2.msra.mxu0 0.0
    %465 = vmatprep.subr.mxu0 0.0
    %466 = vmatpush2.msra.mxu0 0.0
    %467 = vmatprep.subr.mxu0 0.0
    %468 = vmatpush2.msra.mxu0 0.0
    %469 = vmatprep.subr.mxu0 0.0
    %470 = vmatpush2.msra.mxu0 0.0
    %471 = vmatprep.subr.mxu0 0.0
    %472 = vmatpush2.msra.mxu0 0.0
    %473 = vmatprep.subr.mxu0 0.0
    %474 = vmatpush2.msra.mxu0 0.0
    %475 = vmatprep.subr.mxu0 0.0
    %476 = vmatpush2.msra.mxu0 0.0
    %477 = vmatprep.subr.mxu0 0.0
    %478 = vmatpush2.msra.mxu0 0.0
    %479 = vmatprep.subr.mxu0 0.0
    %480 = vmatpush2.msra.mxu0 0.0
    %481 = vmatprep.subr.mxu0 0.0
    %482 = vmatpush2.msra.mxu0 0.0
    %483 = vmatprep.subr.mxu0 0.0
    %484 = vmatpush2.msra.mxu0 0.0
    %485 = vmatprep.subr.mxu0 0.0
    %486 = vmatpush2.msra.mxu0 0.0
    %487 = vmatprep.subr.mxu0 0.0
    %488 = vmatpush2.msra.mxu0 0.0
    %489 = vmatprep.subr.mxu0 0.0
    %490 = vmatpush2.msra.mxu0 0.0
    %491 = vmatprep.subr.mxu0 0.0
    %492 = vmatpush2.msra.mxu0 0.0
    %493 = vmatprep.subr.mxu0 0.0
    %494 = vmatpush2.msra.mxu0 0.0
    %495 = vmatprep.mubr.f32.mxu0 0.0
    %v496 = vand.u32 %v162, 4294901760
    %v497 = vsub.f32 %v162, %v496
    %498 = vmatmul.mubr.f32.gmra.mxu0 %v497
    %v499 = vpop.f32.mrf.mxu0
    %v500 = vadd.f32 %v394, %v499
    %v501 = vpop.f32.mrf.mxu0
    %502 = vmatprep.mubr.f32.mxu0 0.0
    %v503 = vand.u32 %v165, 4294901760
    %v504 = vsub.f32 %v165, %v503
    %505 = vmatmul.mubr.f32.gmra.mxu0 %v504
    %v506 = vpop.f32.mrf.mxu0
    %v507 = vadd.f32 %v400, %v506
    %v508 = vpop.f32.mrf.mxu0
    %509 = vmatprep.mubr.f32.mxu0 0.0
    %v510 = vand.u32 %v168, 4294901760
    %v511 = vsub.f32 %v168, %v510
    %512 = vmatmul.mubr.f32.gmra.mxu0 %v511
    %v513 = vpop.f32.mrf.mxu0
    %v514 = vadd.f32 %v406, %v513
    %v515 = vpop.f32.mrf.mxu0
    %516 = vmatprep.mubr.f32.mxu0 0.0
    %v517 = vand.u32 %v171, 4294901760
    %v518 = vsub.f32 %v171, %v517
    %519 = vmatmul.mubr.f32.gmra.mxu0 %v518
    %v520 = vpop.f32.mrf.mxu0
    %v521 = vadd.f32 %v412, %v520
    %v522 = vpop.f32.mrf.mxu0
    %523 = vdwg.mxu0
    %524 = vmatprep.subr.mxu0 0.0
    %525 = vmatpush1.msra.mxu0 0.0
    %526 = vmatprep.subr.mxu0 0.0
    %527 = vmatpush1.msra.mxu0 0.0
    %528 = vmatprep.subr.mxu0 0.0
    %529 = vmatpush1.msra.mxu0 0.0
    %530 = vmatprep.subr.mxu0 0.0
    %531 = vmatpush1.msra.mxu0 0.0
    %532 = vmatprep.subr.mxu0 0.0
    %533 = vmatpush1.msra.mxu0 0.0
    %534 = vmatprep.subr.mxu0 0.0
    %535 = vmatpush1.msra.mxu0 0.0
    %536 = vmatprep.subr.mxu0 0.0
    %537 = vmatpush1.msra.mxu0 0.0
    %538 = vmatprep.subr.mxu0 0.0
    %539 = vmatpush1.msra.mxu0 0.0
    %540 = vmatprep.subr.mxu0 0.0
    %v541 = vand.u32 %v94, 4294901760
    %542 = vmatpush1.msra.mxu0 %v541
    %543 = vmatprep.subr.mxu0 0.0
    %v544 = vand.u32 %v93, 4294901760
    %545 = vmatpush1.msra.mxu0 %v544
    %546 = vmatprep.subr.mxu0 0.0
    %v547 = vand.u32 %v92, 4294901760
    %548 = vmatpush1.msra.mxu0 %v547
    %549 = vmatprep.subr.mxu0 0.0
    %v550 = vand.u32 %v91, 4294901760
    %551 = vmatpush1.msra.mxu0 %v550
    %552 = vmatprep.subr.mxu0 0.0
    %v553 = vand.u32 %v90, 4294901760
    %554 = vmatpush1.msra.mxu0 %v553
    %555 = vmatprep.subr.mxu0 0.0
    %v556 = vand.u32 %v89, 4294901760
    %557 = vmatpush1.msra.mxu0 %v556
    %558 = vmatprep.subr.mxu0 0.0
    %v559 = vand.u32 %v88, 4294901760
    %560 = vmatpush1.msra.mxu0 %v559
    %561 = vmatprep.subr.mxu0 0.0
    %v562 = vand.u32 %v87, 4294901760
    %563 = vmatpush1.msra.mxu0 %v562
    %564 = vmatprep.subr.mxu0 0.0
    %565 = vmatpush2.msra.mxu0 0.0
    %566 = vmatprep.subr.mxu0 0.0
    %567 = vmatpush2.msra.mxu0 0.0
    %568 = vmatprep.subr.mxu0 0.0
    %569 = vmatpush2.msra.mxu0 0.0
    %570 = vmatprep.subr.mxu0 0.0
    %571 = vmatpush2.msra.mxu0 0.0
    %572 = vmatprep.subr.mxu0 0.0
    %573 = vmatpush2.msra.mxu0 0.0
    %574 = vmatprep.subr.mxu0 0.0
    %575 = vmatpush2.msra.mxu0 0.0
    %576 = vmatprep.subr.mxu0 0.0
    %577 = vmatpush2.msra.mxu0 0.0
    %578 = vmatprep.subr.mxu0 0.0
    %579 = vmatpush2.msra.mxu0 0.0
    %580 = vmatprep.subr.mxu0 0.0
    %581 = vmatpush2.msra.mxu0 0.0
    %582 = vmatprep.subr.mxu0 0.0
    %583 = vmatpush2.msra.mxu0 0.0
    %584 = vmatprep.subr.mxu0 0.0
    %585 = vmatpush2.msra.mxu0 0.0
    %586 = vmatprep.subr.mxu0 0.0
    %587 = vmatpush2.msra.mxu0 0.0
    %588 = vmatprep.subr.mxu0 0.0
    %589 = vmatpush2.msra.mxu0 0.0
    %590 = vmatprep.subr.mxu0 0.0
    %591 = vmatpush2.msra.mxu0 0.0
    %592 = vmatprep.subr.mxu0 0.0
    %593 = vmatpush2.msra.mxu0 0.0
    %594 = vmatprep.subr.mxu0 0.0
    %595 = vmatpush2.msra.mxu0 0.0
    %596 = vmatprep.mubr.f32.mxu0 0.0
    %v597 = vand.u32 %v162, 4294901760
    %v598 = vsub.f32 %v162, %v597
    %v599 = vand.u32 %v598, 4294901760
    %600 = vmatmul.mubr.f32.gmra.mxu0 %v599
    %v601 = vpop.f32.mrf.mxu0
    %v602 = vadd.f32 %v500, %v601
    %v603 = vpop.f32.mrf.mxu0
    %604 = vmatprep.mubr.f32.mxu0 0.0
    %v605 = vand.u32 %v165, 4294901760
    %v606 = vsub.f32 %v165, %v605
    %v607 = vand.u32 %v606, 4294901760
    %608 = vmatmul.mubr.f32.gmra.mxu0 %v607
    %v609 = vpop.f32.mrf.mxu0
    %v610 = vadd.f32 %v507, %v609
    %v611 = vpop.f32.mrf.mxu0
    %612 = vmatprep.mubr.f32.mxu0 0.0
    %v613 = vand.u32 %v168, 4294901760
    %v614 = vsub.f32 %v168, %v613
    %v615 = vand.u32 %v614, 4294901760
    %616 = vmatmul.mubr.f32.gmra.mxu0 %v615
    %v617 = vpop.f32.mrf.mxu0
    %v618 = vadd.f32 %v514, %v617
    %v619 = vpop.f32.mrf.mxu0
    %620 = vmatprep.mubr.f32.mxu0 0.0
    %v621 = vand.u32 %v171, 4294901760
    %v622 = vsub.f32 %v171, %v621
    %v623 = vand.u32 %v622, 4294901760
    %624 = vmatmul.mubr.f32.gmra.mxu0 %v623
    %v625 = vpop.f32.mrf.mxu0
    %v626 = vadd.f32 %v521, %v625
    %v627 = vpop.f32.mrf.mxu0
    %628 = vdwg.mxu0
    %629 = vmatprep.subr.mxu0 0.0
    %630 = vmatpush1.msra.mxu0 0.0
    %631 = vmatprep.subr.mxu0 0.0
    %632 = vmatpush1.msra.mxu0 0.0
    %633 = vmatprep.subr.mxu0 0.0
    %634 = vmatpush1.msra.mxu0 0.0
    %635 = vmatprep.subr.mxu0 0.0
    %636 = vmatpush1.msra.mxu0 0.0
    %637 = vmatprep.subr.mxu0 0.0
    %638 = vmatpush1.msra.mxu0 0.0
    %639 = vmatprep.subr.mxu0 0.0
    %640 = vmatpush1.msra.mxu0 0.0
    %641 = vmatprep.subr.mxu0 0.0
    %642 = vmatpush1.msra.mxu0 0.0
    %643 = vmatprep.subr.mxu0 0.0
    %644 = vmatpush1.msra.mxu0 0.0
    %645 = vmatprep.subr.mxu0 0.0
    %v646 = vand.u32 %v94, 4294901760
    %v647 = vsub.f32 %v94, %v646
    %v648 = vand.u32 %v647, 4294901760
    %649 = vmatpush1.msra.mxu0 %v648
    %650 = vmatprep.subr.mxu0 0.0
    %v651 = vand.u32 %v93, 4294901760
    %v652 = vsub.f32 %v93, %v651
    %v653 = vand.u32 %v652, 4294901760
    %654 = vmatpush1.msra.mxu0 %v653
    %655 = vmatprep.subr.mxu0 0.0
    %v656 = vand.u32 %v92, 4294901760
    %v657 = vsub.f32 %v92, %v656
    %v658 = vand.u32 %v657, 4294901760
    %659 = vmatpush1.msra.mxu0 %v658
    %660 = vmatprep.subr.mxu0 0.0
    %v661 = vand.u32 %v91, 4294901760
    %v662 = vsub.f32 %v91, %v661
    %v663 = vand.u32 %v662, 4294901760
    %664 = vmatpush1.msra.mxu0 %v663
    %665 = vmatprep.subr.mxu0 0.0
    %v666 = vand.u32 %v90, 4294901760
    %v667 = vsub.f32 %v90, %v666
    %v668 = vand.u32 %v667, 4294901760
    %669 = vmatpush1.msra.mxu0 %v668
    %670 = vmatprep.subr.mxu0 0.0
    %v671 = vand.u32 %v89, 4294901760
    %v672 = vsub.f32 %v89, %v671
    %v673 = vand.u32 %v672, 4294901760
    %674 = vmatpush1.msra.mxu0 %v673
    %675 = vmatprep.subr.mxu0 0.0
    %v676 = vand.u32 %v88, 4294901760
    %v677 = vsub.f32 %v88, %v676
    %v678 = vand.u32 %v677, 4294901760
    %679 = vmatpush1.msra.mxu0 %v678
    %680 = vmatprep.subr.mxu0 0.0
    %v681 = vand.u32 %v87, 4294901760
    %v682 = vsub.f32 %v87, %v681
    %v683 = vand.u32 %v682, 4294901760
    %684 = vmatpush1.msra.mxu0 %v683
    %685 = vmatprep.subr.mxu0 0.0
    %686 = vmatpush2.msra.mxu0 0.0
    %687 = vmatprep.subr.mxu0 0.0
    %688 = vmatpush2.msra.mxu0 0.0
    %689 = vmatprep.subr.mxu0 0.0
    %690 = vmatpush2.msra.mxu0 0.0
    %691 = vmatprep.subr.mxu0 0.0
    %692 = vmatpush2.msra.mxu0 0.0
    %693 = vmatprep.subr.mxu0 0.0
    %694 = vmatpush2.msra.mxu0 0.0
    %695 = vmatprep.subr.mxu0 0.0
    %696 = vmatpush2.msra.mxu0 0.0
    %697 = vmatprep.subr.mxu0 0.0
    %698 = vmatpush2.msra.mxu0 0.0
    %699 = vmatprep.subr.mxu0 0.0
    %700 = vmatpush2.msra.mxu0 0.0
    %701 = vmatprep.subr.mxu0 0.0
    %702 = vmatpush2.msra.mxu0 0.0
    %703 = vmatprep.subr.mxu0 0.0
    %704 = vmatpush2.msra.mxu0 0.0
    %705 = vmatprep.subr.mxu0 0.0
    %706 = vmatpush2.msra.mxu0 0.0
    %707 = vmatprep.subr.mxu0 0.0
    %708 = vmatpush2.msra.mxu0 0.0
    %709 = vmatprep.subr.mxu0 0.0
    %710 = vmatpush2.msra.mxu0 0.0
    %711 = vmatprep.subr.mxu0 0.0
    %712 = vmatpush2.msra.mxu0 0.0
    %713 = vmatprep.subr.mxu0 0.0
    %714 = vmatpush2.msra.mxu0 0.0
    %715 = vmatprep.subr.mxu0 0.0
    %716 = vmatpush2.msra.mxu0 0.0
    %717 = vmatprep.mubr.f32.mxu0 0.0
    %v718 = vand.u32 %v162, 4294901760
    %719 = vmatmul.mubr.f32.gmra.mxu0 %v718
    %v720 = vpop.f32.mrf.mxu0
    %v721 = vadd.f32 %v602, %v720
    %v722 = vpop.f32.mrf.mxu0
    %723 = vmatprep.mubr.f32.mxu0 0.0
    %v724 = vand.u32 %v165, 4294901760
    %725 = vmatmul.mubr.f32.gmra.mxu0 %v724
    %v726 = vpop.f32.mrf.mxu0
    %v727 = vadd.f32 %v610, %v726
    %v728 = vpop.f32.mrf.mxu0
    %729 = vmatprep.mubr.f32.mxu0 0.0
    %v730 = vand.u32 %v168, 4294901760
    %731 = vmatmul.mubr.f32.gmra.mxu0 %v730
    %v732 = vpop.f32.mrf.mxu0
    %v733 = vadd.f32 %v618, %v732
    %v734 = vpop.f32.mrf.mxu0
    %735 = vmatprep.mubr.f32.mxu0 0.0
    %v736 = vand.u32 %v171, 4294901760
    %737 = vmatmul.mubr.f32.gmra.mxu0 %v736
    %v738 = vpop.f32.mrf.mxu0
    %v739 = vadd.f32 %v626, %v738
    %v740 = vpop.f32.mrf.mxu0
    %741 = vdwg.mxu0
    %742 = vmatprep.subr.mxu0 0.0
    %743 = vmatpush1.msra.mxu0 0.0
    %744 = vmatprep.subr.mxu0 0.0
    %745 = vmatpush1.msra.mxu0 0.0
    %746 = vmatprep.subr.mxu0 0.0
    %747 = vmatpush1.msra.mxu0 0.0
    %748 = vmatprep.subr.mxu0 0.0
    %749 = vmatpush1.msra.mxu0 0.0
    %750 = vmatprep.subr.mxu0 0.0
    %751 = vmatpush1.msra.mxu0 0.0
    %752 = vmatprep.subr.mxu0 0.0
    %753 = vmatpush1.msra.mxu0 0.0
    %754 = vmatprep.subr.mxu0 0.0
    %755 = vmatpush1.msra.mxu0 0.0
    %756 = vmatprep.subr.mxu0 0.0
    %757 = vmatpush1.msra.mxu0 0.0
    %758 = vmatprep.subr.mxu0 0.0
    %v759 = vand.u32 %v94, 4294901760
    %760 = vmatpush1.msra.mxu0 %v759
    %761 = vmatprep.subr.mxu0 0.0
    %v762 = vand.u32 %v93, 4294901760
    %763 = vmatpush1.msra.mxu0 %v762
    %764 = vmatprep.subr.mxu0 0.0
    %v765 = vand.u32 %v92, 4294901760
    %766 = vmatpush1.msra.mxu0 %v765
    %767 = vmatprep.subr.mxu0 0.0
    %v768 = vand.u32 %v91, 4294901760
    %769 = vmatpush1.msra.mxu0 %v768
    %770 = vmatprep.subr.mxu0 0.0
    %v771 = vand.u32 %v90, 4294901760
    %772 = vmatpush1.msra.mxu0 %v771
    %773 = vmatprep.subr.mxu0 0.0
    %v774 = vand.u32 %v89, 4294901760
    %775 = vmatpush1.msra.mxu0 %v774
    %776 = vmatprep.subr.mxu0 0.0
    %v777 = vand.u32 %v88, 4294901760
    %778 = vmatpush1.msra.mxu0 %v777
    %779 = vmatprep.subr.mxu0 0.0
    %v780 = vand.u32 %v87, 4294901760
    %781 = vmatpush1.msra.mxu0 %v780
    %782 = vmatprep.subr.mxu0 0.0
    %783 = vmatpush2.msra.mxu0 0.0
    %784 = vmatprep.subr.mxu0 0.0
    %785 = vmatpush2.msra.mxu0 0.0
    %786 = vmatprep.subr.mxu0 0.0
    %787 = vmatpush2.msra.mxu0 0.0
    %788 = vmatprep.subr.mxu0 0.0
    %789 = vmatpush2.msra.mxu0 0.0
    %790 = vmatprep.subr.mxu0 0.0
    %791 = vmatpush2.msra.mxu0 0.0
    %792 = vmatprep.subr.mxu0 0.0
    %793 = vmatpush2.msra.mxu0 0.0
    %794 = vmatprep.subr.mxu0 0.0
    %795 = vmatpush2.msra.mxu0 0.0
    %796 = vmatprep.subr.mxu0 0.0
    %797 = vmatpush2.msra.mxu0 0.0
    %798 = vmatprep.subr.mxu0 0.0
    %799 = vmatpush2.msra.mxu0 0.0
    %800 = vmatprep.subr.mxu0 0.0
    %801 = vmatpush2.msra.mxu0 0.0
    %802 = vmatprep.subr.mxu0 0.0
    %803 = vmatpush2.msra.mxu0 0.0
    %804 = vmatprep.subr.mxu0 0.0
    %805 = vmatpush2.msra.mxu0 0.0
    %806 = vmatprep.subr.mxu0 0.0
    %807 = vmatpush2.msra.mxu0 0.0
    %808 = vmatprep.subr.mxu0 0.0
    %809 = vmatpush2.msra.mxu0 0.0
    %810 = vmatprep.subr.mxu0 0.0
    %811 = vmatpush2.msra.mxu0 0.0
    %812 = vmatprep.subr.mxu0 0.0
    %813 = vmatpush2.msra.mxu0 0.0
    %814 = vmatprep.mubr.f32.mxu0 0.0
    %v815 = vand.u32 %v162, 4294901760
    %816 = vmatmul.mubr.f32.gmra.mxu0 %v815
    %v817 = vpop.f32.mrf.mxu0
    %v818 = vadd.f32 %v721, %v817
    %v819 = vpop.f32.mrf.mxu0
    %820 = vmatprep.mubr.f32.mxu0 0.0
    %v821 = vand.u32 %v165, 4294901760
    %822 = vmatmul.mubr.f32.gmra.mxu0 %v821
    %v823 = vpop.f32.mrf.mxu0
    %v824 = vadd.f32 %v727, %v823
    %v825 = vpop.f32.mrf.mxu0
    %826 = vmatprep.mubr.f32.mxu0 0.0
    %v827 = vand.u32 %v168, 4294901760
    %828 = vmatmul.mubr.f32.gmra.mxu0 %v827
    %v829 = vpop.f32.mrf.mxu0
    %v830 = vadd.f32 %v733, %v829
    %v831 = vpop.f32.mrf.mxu0
    %832 = vmatprep.mubr.f32.mxu0 0.0
    %v833 = vand.u32 %v171, 4294901760
    %834 = vmatmul.mubr.f32.gmra.mxu0 %v833
    %v835 = vpop.f32.mrf.mxu0
    %v836 = vadd.f32 %v739, %v835
    %v837 = vpop.f32.mrf.mxu0
    %838 = vdwg.mxu0
    %v839 = vld [vmem:[#allocation7] sm:$0xff]
    %v840 = vld [vmem:[#allocation7 + $0x8] sm:$0xff]
    %v841 = vld [vmem:[#allocation7 + $0x10] sm:$0xff]
    %v842 = vld [vmem:[#allocation7 + $0x18] sm:$0xff]
    %843 = vmatprep.subr.mxu0 0.0
    %v844 = vand.u32 %v155, 4294901760
    %845 = vmatpush1.msra.mxu0 %v844
    %846 = vmatprep.subr.mxu0 0.0
    %v847 = vand.u32 %v154, 4294901760
    %848 = vmatpush1.msra.mxu0 %v847
    %849 = vmatprep.subr.mxu0 0.0
    %v850 = vand.u32 %v153, 4294901760
    %851 = vmatpush1.msra.mxu0 %v850
    %852 = vmatprep.subr.mxu0 0.0
    %v853 = vand.u32 %v152, 4294901760
    %854 = vmatpush1.msra.mxu0 %v853
    %855 = vmatprep.subr.mxu0 0.0
    %v856 = vand.u32 %v151, 4294901760
    %857 = vmatpush1.msra.mxu0 %v856
    %858 = vmatprep.subr.mxu0 0.0
    %v859 = vand.u32 %v150, 4294901760
    %860 = vmatpush1.msra.mxu0 %v859
    %861 = vmatprep.subr.mxu0 0.0
    %v862 = vand.u32 %v149, 4294901760
    %863 = vmatpush1.msra.mxu0 %v862
    %864 = vmatprep.subr.mxu0 0.0
    %v865 = vand.u32 %v148, 4294901760
    %866 = vmatpush1.msra.mxu0 %v865
    %867 = vmatprep.subr.mxu0 0.0
    %v868 = vand.u32 %v147, 4294901760
    %869 = vmatpush1.msra.mxu0 %v868
    %870 = vmatprep.subr.mxu0 0.0
    %v871 = vand.u32 %v146, 4294901760
    %872 = vmatpush1.msra.mxu0 %v871
    %873 = vmatprep.subr.mxu0 0.0
    %v874 = vand.u32 %v145, 4294901760
    %875 = vmatpush1.msra.mxu0 %v874
    %876 = vmatprep.subr.mxu0 0.0
    %v877 = vand.u32 %v144, 4294901760
    %878 = vmatpush1.msra.mxu0 %v877
    %879 = vmatprep.subr.mxu0 0.0
    %v880 = vand.u32 %v143, 4294901760
    %881 = vmatpush1.msra.mxu0 %v880
    %882 = vmatprep.subr.mxu0 0.0
    %v883 = vand.u32 %v142, 4294901760
    %884 = vmatpush1.msra.mxu0 %v883
    %885 = vmatprep.subr.mxu0 0.0
    %v886 = vand.u32 %v141, 4294901760
    %887 = vmatpush1.msra.mxu0 %v886
    %888 = vmatprep.subr.mxu0 0.0
    %v889 = vand.u32 %v140, 4294901760
    %890 = vmatpush1.msra.mxu0 %v889
    %891 = vmatprep.subr.mxu0 0.0
    %892 = vmatpush2.msra.mxu0 0.0
    %893 = vmatprep.subr.mxu0 0.0
    %894 = vmatpush2.msra.mxu0 0.0
    %895 = vmatprep.subr.mxu0 0.0
    %896 = vmatpush2.msra.mxu0 0.0
    %897 = vmatprep.subr.mxu0 0.0
    %898 = vmatpush2.msra.mxu0 0.0
    %899 = vmatprep.subr.mxu0 0.0
    %900 = vmatpush2.msra.mxu0 0.0
    %901 = vmatprep.subr.mxu0 0.0
    %902 = vmatpush2.msra.mxu0 0.0
    %903 = vmatprep.subr.mxu0 0.0
    %904 = vmatpush2.msra.mxu0 0.0
    %905 = vmatprep.subr.mxu0 0.0
    %906 = vmatpush2.msra.mxu0 0.0
    %907 = vmatprep.subr.mxu0 0.0
    %908 = vmatpush2.msra.mxu0 0.0
    %909 = vmatprep.subr.mxu0 0.0
    %910 = vmatpush2.msra.mxu0 0.0
    %911 = vmatprep.subr.mxu0 0.0
    %912 = vmatpush2.msra.mxu0 0.0
    %913 = vmatprep.subr.mxu0 0.0
    %914 = vmatpush2.msra.mxu0 0.0
    %915 = vmatprep.subr.mxu0 0.0
    %916 = vmatpush2.msra.mxu0 0.0
    %917 = vmatprep.subr.mxu0 0.0
    %918 = vmatpush2.msra.mxu0 0.0
    %919 = vmatprep.subr.mxu0 0.0
    %920 = vmatpush2.msra.mxu0 0.0
    %921 = vmatprep.subr.mxu0 0.0
    %922 = vmatpush2.msra.mxu0 0.0
    %923 = vmatprep.mubr.f32.mxu0 0.0
    %v924 = vand.u32 %v839, 4294901760
    %v925 = vsub.f32 %v839, %v924
    %v926 = vand.u32 %v925, 4294901760
    %v927 = vsub.f32 %v925, %v926
    %v928 = vand.u32 %v927, 4294901760
    %929 = vmatmul.mubr.f32.gmra.mxu0 %v928
    %v930 = vpop.f32.mrf.mxu0
    %v931 = vadd.f32 0.0, %v930
    %v932 = vpop.f32.mrf.mxu0
    %933 = vmatprep.mubr.f32.mxu0 0.0
    %v934 = vand.u32 %v840, 4294901760
    %v935 = vsub.f32 %v840, %v934
    %v936 = vand.u32 %v935, 4294901760
    %v937 = vsub.f32 %v935, %v936
    %v938 = vand.u32 %v937, 4294901760
    %939 = vmatmul.mubr.f32.gmra.mxu0 %v938
    %v940 = vpop.f32.mrf.mxu0
    %v941 = vadd.f32 0.0, %v940
    %v942 = vpop.f32.mrf.mxu0
    %943 = vmatprep.mubr.f32.mxu0 0.0
    %v944 = vand.u32 %v841, 4294901760
    %v945 = vsub.f32 %v841, %v944
    %v946 = vand.u32 %v945, 4294901760
    %v947 = vsub.f32 %v945, %v946
    %v948 = vand.u32 %v947, 4294901760
    %949 = vmatmul.mubr.f32.gmra.mxu0 %v948
    %v950 = vpop.f32.mrf.mxu0
    %v951 = vadd.f32 0.0, %v950
    %v952 = vpop.f32.mrf.mxu0
    %953 = vmatprep.mubr.f32.mxu0 0.0
    %v954 = vand.u32 %v842, 4294901760
    %v955 = vsub.f32 %v842, %v954
    %v956 = vand.u32 %v955, 4294901760
    %v957 = vsub.f32 %v955, %v956
    %v958 = vand.u32 %v957, 4294901760
    %959 = vmatmul.mubr.f32.gmra.mxu0 %v958
    %v960 = vpop.f32.mrf.mxu0
    %v961 = vadd.f32 0.0, %v960
    %v962 = vpop.f32.mrf.mxu0
    %963 = vdwg.mxu0
    %964 = vmatprep.subr.mxu0 0.0
    %v965 = vand.u32 %v155, 4294901760
    %v966 = vsub.f32 %v155, %v965
    %v967 = vand.u32 %v966, 4294901760
    %v968 = vsub.f32 %v966, %v967
    %v969 = vand.u32 %v968, 4294901760
    %970 = vmatpush1.msra.mxu0 %v969
    %971 = vmatprep.subr.mxu0 0.0
    %v972 = vand.u32 %v154, 4294901760
    %v973 = vsub.f32 %v154, %v972
    %v974 = vand.u32 %v973, 4294901760
    %v975 = vsub.f32 %v973, %v974
    %v976 = vand.u32 %v975, 4294901760
    %977 = vmatpush1.msra.mxu0 %v976
    %978 = vmatprep.subr.mxu0 0.0
    %v979 = vand.u32 %v153, 4294901760
    %v980 = vsub.f32 %v153, %v979
    %v981 = vand.u32 %v980, 4294901760
    %v982 = vsub.f32 %v980, %v981
    %v983 = vand.u32 %v982, 4294901760
    %984 = vmatpush1.msra.mxu0 %v983
    %985 = vmatprep.subr.mxu0 0.0
    %v986 = vand.u32 %v152, 4294901760
    %v987 = vsub.f32 %v152, %v986
    %v988 = vand.u32 %v987, 4294901760
    %v989 = vsub.f32 %v987, %v988
    %v990 = vand.u32 %v989, 4294901760
    %991 = vmatpush1.msra.mxu0 %v990
    %992 = vmatprep.subr.mxu0 0.0
    %v993 = vand.u32 %v151, 4294901760
    %v994 = vsub.f32 %v151, %v993
    %v995 = vand.u32 %v994, 4294901760
    %v996 = vsub.f32 %v994, %v995
    %v997 = vand.u32 %v996, 4294901760
    %998 = vmatpush1.msra.mxu0 %v997
    %999 = vmatprep.subr.mxu0 0.0
    %v1000 = vand.u32 %v150, 4294901760
    %v1001 = vsub.f32 %v150, %v1000
    %v1002 = vand.u32 %v1001, 4294901760
    %v1003 = vsub.f32 %v1001, %v1002
    %v1004 = vand.u32 %v1003, 4294901760
    %1005 = vmatpush1.msra.mxu0 %v1004
    %1006 = vmatprep.subr.mxu0 0.0
    %v1007 = vand.u32 %v149, 4294901760
    %v1008 = vsub.f32 %v149, %v1007
    %v1009 = vand.u32 %v1008, 4294901760
    %v1010 = vsub.f32 %v1008, %v1009
    %v1011 = vand.u32 %v1010, 4294901760
    %1012 = vmatpush1.msra.mxu0 %v1011
    %1013 = vmatprep.subr.mxu0 0.0
    %v1014 = vand.u32 %v148, 4294901760
    %v1015 = vsub.f32 %v148, %v1014
    %v1016 = vand.u32 %v1015, 4294901760
    %v1017 = vsub.f32 %v1015, %v1016
    %v1018 = vand.u32 %v1017, 4294901760
    %1019 = vmatpush1.msra.mxu0 %v1018
    %1020 = vmatprep.subr.mxu0 0.0
    %v1021 = vand.u32 %v147, 4294901760
    %v1022 = vsub.f32 %v147, %v1021
    %v1023 = vand.u32 %v1022, 4294901760
    %v1024 = vsub.f32 %v1022, %v1023
    %v1025 = vand.u32 %v1024, 4294901760
    %1026 = vmatpush1.msra.mxu0 %v1025
    %1027 = vmatprep.subr.mxu0 0.0
    %v1028 = vand.u32 %v146, 4294901760
    %v1029 = vsub.f32 %v146, %v1028
    %v1030 = vand.u32 %v1029, 4294901760
    %v1031 = vsub.f32 %v1029, %v1030
    %v1032 = vand.u32 %v1031, 4294901760
    %1033 = vmatpush1.msra.mxu0 %v1032
    %1034 = vmatprep.subr.mxu0 0.0
    %v1035 = vand.u32 %v145, 4294901760
    %v1036 = vsub.f32 %v145, %v1035
    %v1037 = vand.u32 %v1036, 4294901760
    %v1038 = vsub.f32 %v1036, %v1037
    %v1039 = vand.u32 %v1038, 4294901760
    %1040 = vmatpush1.msra.mxu0 %v1039
    %1041 = vmatprep.subr.mxu0 0.0
    %v1042 = vand.u32 %v144, 4294901760
    %v1043 = vsub.f32 %v144, %v1042
    %v1044 = vand.u32 %v1043, 4294901760
    %v1045 = vsub.f32 %v1043, %v1044
    %v1046 = vand.u32 %v1045, 4294901760
    %1047 = vmatpush1.msra.mxu0 %v1046
    %1048 = vmatprep.subr.mxu0 0.0
    %v1049 = vand.u32 %v143, 4294901760
    %v1050 = vsub.f32 %v143, %v1049
    %v1051 = vand.u32 %v1050, 4294901760
    %v1052 = vsub.f32 %v1050, %v1051
    %v1053 = vand.u32 %v1052, 4294901760
    %1054 = vmatpush1.msra.mxu0 %v1053
    %1055 = vmatprep.subr.mxu0 0.0
    %v1056 = vand.u32 %v142, 4294901760
    %v1057 = vsub.f32 %v142, %v1056
    %v1058 = vand.u32 %v1057, 4294901760
    %v1059 = vsub.f32 %v1057, %v1058
    %v1060 = vand.u32 %v1059, 4294901760
    %1061 = vmatpush1.msra.mxu0 %v1060
    %1062 = vmatprep.subr.mxu0 0.0
    %v1063 = vand.u32 %v141, 4294901760
    %v1064 = vsub.f32 %v141, %v1063
    %v1065 = vand.u32 %v1064, 4294901760
    %v1066 = vsub.f32 %v1064, %v1065
    %v1067 = vand.u32 %v1066, 4294901760
    %1068 = vmatpush1.msra.mxu0 %v1067
    %1069 = vmatprep.subr.mxu0 0.0
    %v1070 = vand.u32 %v140, 4294901760
    %v1071 = vsub.f32 %v140, %v1070
    %v1072 = vand.u32 %v1071, 4294901760
    %v1073 = vsub.f32 %v1071, %v1072
    %v1074 = vand.u32 %v1073, 4294901760
    %1075 = vmatpush1.msra.mxu0 %v1074
    %1076 = vmatprep.subr.mxu0 0.0
    %1077 = vmatpush2.msra.mxu0 0.0
    %1078 = vmatprep.subr.mxu0 0.0
    %1079 = vmatpush2.msra.mxu0 0.0
    %1080 = vmatprep.subr.mxu0 0.0
    %1081 = vmatpush2.msra.mxu0 0.0
    %1082 = vmatprep.subr.mxu0 0.0
    %1083 = vmatpush2.msra.mxu0 0.0
    %1084 = vmatprep.subr.mxu0 0.0
    %1085 = vmatpush2.msra.mxu0 0.0
    %1086 = vmatprep.subr.mxu0 0.0
    %1087 = vmatpush2.msra.mxu0 0.0
    %1088 = vmatprep.subr.mxu0 0.0
    %1089 = vmatpush2.msra.mxu0 0.0
    %1090 = vmatprep.subr.mxu0 0.0
    %1091 = vmatpush2.msra.mxu0 0.0
    %1092 = vmatprep.subr.mxu0 0.0
    %1093 = vmatpush2.msra.mxu0 0.0
    %1094 = vmatprep.subr.mxu0 0.0
    %1095 = vmatpush2.msra.mxu0 0.0
    %1096 = vmatprep.subr.mxu0 0.0
    %1097 = vmatpush2.msra.mxu0 0.0
    %1098 = vmatprep.subr.mxu0 0.0
    %1099 = vmatpush2.msra.mxu0 0.0
    %1100 = vmatprep.subr.mxu0 0.0
    %1101 = vmatpush2.msra.mxu0 0.0
    %1102 = vmatprep.subr.mxu0 0.0
    %1103 = vmatpush2.msra.mxu0 0.0
    %1104 = vmatprep.subr.mxu0 0.0
    %1105 = vmatpush2.msra.mxu0 0.0
    %1106 = vmatprep.subr.mxu0 0.0
    %1107 = vmatpush2.msra.mxu0 0.0
    %1108 = vmatprep.mubr.f32.mxu0 0.0
    %v1109 = vand.u32 %v839, 4294901760
    %1110 = vmatmul.mubr.f32.gmra.mxu0 %v1109
    %v1111 = vpop.f32.mrf.mxu0
    %v1112 = vadd.f32 %v931, %v1111
    %v1113 = vpop.f32.mrf.mxu0
    %1114 = vmatprep.mubr.f32.mxu0 0.0
    %v1115 = vand.u32 %v840, 4294901760
    %1116 = vmatmul.mubr.f32.gmra.mxu0 %v1115
    %v1117 = vpop.f32.mrf.mxu0
    %v1118 = vadd.f32 %v941, %v1117
    %v1119 = vpop.f32.mrf.mxu0
    %1120 = vmatprep.mubr.f32.mxu0 0.0
    %v1121 = vand.u32 %v841, 4294901760
    %1122 = vmatmul.mubr.f32.gmra.mxu0 %v1121
    %v1123 = vpop.f32.mrf.mxu0
    %v1124 = vadd.f32 %v951, %v1123
    %v1125 = vpop.f32.mrf.mxu0
    %1126 = vmatprep.mubr.f32.mxu0 0.0
    %v1127 = vand.u32 %v842, 4294901760
    %1128 = vmatmul.mubr.f32.gmra.mxu0 %v1127
    %v1129 = vpop.f32.mrf.mxu0
    %v1130 = vadd.f32 %v961, %v1129
    %v1131 = vpop.f32.mrf.mxu0
    %1132 = vdwg.mxu0
    %1133 = vmatprep.subr.mxu0 0.0
    %v1134 = vand.u32 %v155, 4294901760
    %v1135 = vsub.f32 %v155, %v1134
    %1136 = vmatpush1.msra.mxu0 %v1135
    %1137 = vmatprep.subr.mxu0 0.0
    %v1138 = vand.u32 %v154, 4294901760
    %v1139 = vsub.f32 %v154, %v1138
    %1140 = vmatpush1.msra.mxu0 %v1139
    %1141 = vmatprep.subr.mxu0 0.0
    %v1142 = vand.u32 %v153, 4294901760
    %v1143 = vsub.f32 %v153, %v1142
    %1144 = vmatpush1.msra.mxu0 %v1143
    %1145 = vmatprep.subr.mxu0 0.0
    %v1146 = vand.u32 %v152, 4294901760
    %v1147 = vsub.f32 %v152, %v1146
    %1148 = vmatpush1.msra.mxu0 %v1147
    %1149 = vmatprep.subr.mxu0 0.0
    %v1150 = vand.u32 %v151, 4294901760
    %v1151 = vsub.f32 %v151, %v1150
    %1152 = vmatpush1.msra.mxu0 %v1151
    %1153 = vmatprep.subr.mxu0 0.0
    %v1154 = vand.u32 %v150, 4294901760
    %v1155 = vsub.f32 %v150, %v1154
    %1156 = vmatpush1.msra.mxu0 %v1155
    %1157 = vmatprep.subr.mxu0 0.0
    %v1158 = vand.u32 %v149, 4294901760
    %v1159 = vsub.f32 %v149, %v1158
    %1160 = vmatpush1.msra.mxu0 %v1159
    %1161 = vmatprep.subr.mxu0 0.0
    %v1162 = vand.u32 %v148, 4294901760
    %v1163 = vsub.f32 %v148, %v1162
    %1164 = vmatpush1.msra.mxu0 %v1163
    %1165 = vmatprep.subr.mxu0 0.0
    %v1166 = vand.u32 %v147, 4294901760
    %v1167 = vsub.f32 %v147, %v1166
    %1168 = vmatpush1.msra.mxu0 %v1167
    %1169 = vmatprep.subr.mxu0 0.0
    %v1170 = vand.u32 %v146, 4294901760
    %v1171 = vsub.f32 %v146, %v1170
    %1172 = vmatpush1.msra.mxu0 %v1171
    %1173 = vmatprep.subr.mxu0 0.0
    %v1174 = vand.u32 %v145, 4294901760
    %v1175 = vsub.f32 %v145, %v1174
    %1176 = vmatpush1.msra.mxu0 %v1175
    %1177 = vmatprep.subr.mxu0 0.0
    %v1178 = vand.u32 %v144, 4294901760
    %v1179 = vsub.f32 %v144, %v1178
    %1180 = vmatpush1.msra.mxu0 %v1179
    %1181 = vmatprep.subr.mxu0 0.0
    %v1182 = vand.u32 %v143, 4294901760
    %v1183 = vsub.f32 %v143, %v1182
    %1184 = vmatpush1.msra.mxu0 %v1183
    %1185 = vmatprep.subr.mxu0 0.0
    %v1186 = vand.u32 %v142, 4294901760
    %v1187 = vsub.f32 %v142, %v1186
    %1188 = vmatpush1.msra.mxu0 %v1187
    %1189 = vmatprep.subr.mxu0 0.0
    %v1190 = vand.u32 %v141, 4294901760
    %v1191 = vsub.f32 %v141, %v1190
    %1192 = vmatpush1.msra.mxu0 %v1191
    %1193 = vmatprep.subr.mxu0 0.0
    %v1194 = vand.u32 %v140, 4294901760
    %v1195 = vsub.f32 %v140, %v1194
    %1196 = vmatpush1.msra.mxu0 %v1195
    %1197 = vmatprep.subr.mxu0 0.0
    %1198 = vmatpush2.msra.mxu0 0.0
    %1199 = vmatprep.subr.mxu0 0.0
    %1200 = vmatpush2.msra.mxu0 0.0
    %1201 = vmatprep.subr.mxu0 0.0
    %1202 = vmatpush2.msra.mxu0 0.0
    %1203 = vmatprep.subr.mxu0 0.0
    %1204 = vmatpush2.msra.mxu0 0.0
    %1205 = vmatprep.subr.mxu0 0.0
    %1206 = vmatpush2.msra.mxu0 0.0
    %1207 = vmatprep.subr.mxu0 0.0
    %1208 = vmatpush2.msra.mxu0 0.0
    %1209 = vmatprep.subr.mxu0 0.0
    %1210 = vmatpush2.msra.mxu0 0.0
    %1211 = vmatprep.subr.mxu0 0.0
    %1212 = vmatpush2.msra.mxu0 0.0
    %1213 = vmatprep.subr.mxu0 0.0
    %1214 = vmatpush2.msra.mxu0 0.0
    %1215 = vmatprep.subr.mxu0 0.0
    %1216 = vmatpush2.msra.mxu0 0.0
    %1217 = vmatprep.subr.mxu0 0.0
    %1218 = vmatpush2.msra.mxu0 0.0
    %1219 = vmatprep.subr.mxu0 0.0
    %1220 = vmatpush2.msra.mxu0 0.0
    %1221 = vmatprep.subr.mxu0 0.0
    %1222 = vmatpush2.msra.mxu0 0.0
    %1223 = vmatprep.subr.mxu0 0.0
    %1224 = vmatpush2.msra.mxu0 0.0
    %1225 = vmatprep.subr.mxu0 0.0
    %1226 = vmatpush2.msra.mxu0 0.0
    %1227 = vmatprep.subr.mxu0 0.0
    %1228 = vmatpush2.msra.mxu0 0.0
    %1229 = vmatprep.mubr.f32.mxu0 0.0
    %v1230 = vand.u32 %v839, 4294901760
    %v1231 = vsub.f32 %v839, %v1230
    %1232 = vmatmul.mubr.f32.gmra.mxu0 %v1231
    %v1233 = vpop.f32.mrf.mxu0
    %v1234 = vadd.f32 %v1112, %v1233
    %v1235 = vpop.f32.mrf.mxu0
    %1236 = vmatprep.mubr.f32.mxu0 0.0
    %v1237 = vand.u32 %v840, 4294901760
    %v1238 = vsub.f32 %v840, %v1237
    %1239 = vmatmul.mubr.f32.gmra.mxu0 %v1238
    %v1240 = vpop.f32.mrf.mxu0
    %v1241 = vadd.f32 %v1118, %v1240
    %v1242 = vpop.f32.mrf.mxu0
    %1243 = vmatprep.mubr.f32.mxu0 0.0
    %v1244 = vand.u32 %v841, 4294901760
    %v1245 = vsub.f32 %v841, %v1244
    %1246 = vmatmul.mubr.f32.gmra.mxu0 %v1245
    %v1247 = vpop.f32.mrf.mxu0
    %v1248 = vadd.f32 %v1124, %v1247
    %v1249 = vpop.f32.mrf.mxu0
    %1250 = vmatprep.mubr.f32.mxu0 0.0
    %v1251 = vand.u32 %v842, 4294901760
    %v1252 = vsub.f32 %v842, %v1251
    %1253 = vmatmul.mubr.f32.gmra.mxu0 %v1252
    %v1254 = vpop.f32.mrf.mxu0
    %v1255 = vadd.f32 %v1130, %v1254
    %v1256 = vpop.f32.mrf.mxu0
    %1257 = vdwg.mxu0
    %1258 = vmatprep.subr.mxu0 0.0
    %v1259 = vand.u32 %v155, 4294901760
    %1260 = vmatpush1.msra.mxu0 %v1259
    %1261 = vmatprep.subr.mxu0 0.0
    %v1262 = vand.u32 %v154, 4294901760
    %1263 = vmatpush1.msra.mxu0 %v1262
    %1264 = vmatprep.subr.mxu0 0.0
    %v1265 = vand.u32 %v153, 4294901760
    %1266 = vmatpush1.msra.mxu0 %v1265
    %1267 = vmatprep.subr.mxu0 0.0
    %v1268 = vand.u32 %v152, 4294901760
    %1269 = vmatpush1.msra.mxu0 %v1268
    %1270 = vmatprep.subr.mxu0 0.0
    %v1271 = vand.u32 %v151, 4294901760
    %1272 = vmatpush1.msra.mxu0 %v1271
    %1273 = vmatprep.subr.mxu0 0.0
    %v1274 = vand.u32 %v150, 4294901760
    %1275 = vmatpush1.msra.mxu0 %v1274
    %1276 = vmatprep.subr.mxu0 0.0
    %v1277 = vand.u32 %v149, 4294901760
    %1278 = vmatpush1.msra.mxu0 %v1277
    %1279 = vmatprep.subr.mxu0 0.0
    %v1280 = vand.u32 %v148, 4294901760
    %1281 = vmatpush1.msra.mxu0 %v1280
    %1282 = vmatprep.subr.mxu0 0.0
    %v1283 = vand.u32 %v147, 4294901760
    %1284 = vmatpush1.msra.mxu0 %v1283
    %1285 = vmatprep.subr.mxu0 0.0
    %v1286 = vand.u32 %v146, 4294901760
    %1287 = vmatpush1.msra.mxu0 %v1286
    %1288 = vmatprep.subr.mxu0 0.0
    %v1289 = vand.u32 %v145, 4294901760
    %1290 = vmatpush1.msra.mxu0 %v1289
    %1291 = vmatprep.subr.mxu0 0.0
    %v1292 = vand.u32 %v144, 4294901760
    %1293 = vmatpush1.msra.mxu0 %v1292
    %1294 = vmatprep.subr.mxu0 0.0
    %v1295 = vand.u32 %v143, 4294901760
    %1296 = vmatpush1.msra.mxu0 %v1295
    %1297 = vmatprep.subr.mxu0 0.0
    %v1298 = vand.u32 %v142, 4294901760
    %1299 = vmatpush1.msra.mxu0 %v1298
    %1300 = vmatprep.subr.mxu0 0.0
    %v1301 = vand.u32 %v141, 4294901760
    %1302 = vmatpush1.msra.mxu0 %v1301
    %1303 = vmatprep.subr.mxu0 0.0
    %v1304 = vand.u32 %v140, 4294901760
    %1305 = vmatpush1.msra.mxu0 %v1304
    %1306 = vmatprep.subr.mxu0 0.0
    %1307 = vmatpush2.msra.mxu0 0.0
    %1308 = vmatprep.subr.mxu0 0.0
    %1309 = vmatpush2.msra.mxu0 0.0
    %1310 = vmatprep.subr.mxu0 0.0
    %1311 = vmatpush2.msra.mxu0 0.0
    %1312 = vmatprep.subr.mxu0 0.0
    %1313 = vmatpush2.msra.mxu0 0.0
    %1314 = vmatprep.subr.mxu0 0.0
    %1315 = vmatpush2.msra.mxu0 0.0
    %1316 = vmatprep.subr.mxu0 0.0
    %1317 = vmatpush2.msra.mxu0 0.0
    %1318 = vmatprep.subr.mxu0 0.0
    %1319 = vmatpush2.msra.mxu0 0.0
    %1320 = vmatprep.subr.mxu0 0.0
    %1321 = vmatpush2.msra.mxu0 0.0
    %1322 = vmatprep.subr.mxu0 0.0
    %1323 = vmatpush2.msra.mxu0 0.0
    %1324 = vmatprep.subr.mxu0 0.0
    %1325 = vmatpush2.msra.mxu0 0.0
    %1326 = vmatprep.subr.mxu0 0.0
    %1327 = vmatpush2.msra.mxu0 0.0
    %1328 = vmatprep.subr.mxu0 0.0
    %1329 = vmatpush2.msra.mxu0 0.0
    %1330 = vmatprep.subr.mxu0 0.0
    %1331 = vmatpush2.msra.mxu0 0.0
    %1332 = vmatprep.subr.mxu0 0.0
    %1333 = vmatpush2.msra.mxu0 0.0
    %1334 = vmatprep.subr.mxu0 0.0
    %1335 = vmatpush2.msra.mxu0 0.0
    %1336 = vmatprep.subr.mxu0 0.0
    %1337 = vmatpush2.msra.mxu0 0.0
    %1338 = vmatprep.mubr.f32.mxu0 0.0
    %v1339 = vand.u32 %v839, 4294901760
    %v1340 = vsub.f32 %v839, %v1339
    %v1341 = vand.u32 %v1340, 4294901760
    %1342 = vmatmul.mubr.f32.gmra.mxu0 %v1341
    %v1343 = vpop.f32.mrf.mxu0
    %v1344 = vadd.f32 %v1234, %v1343
    %v1345 = vpop.f32.mrf.mxu0
    %1346 = vmatprep.mubr.f32.mxu0 0.0
    %v1347 = vand.u32 %v840, 4294901760
    %v1348 = vsub.f32 %v840, %v1347
    %v1349 = vand.u32 %v1348, 4294901760
    %1350 = vmatmul.mubr.f32.gmra.mxu0 %v1349
    %v1351 = vpop.f32.mrf.mxu0
    %v1352 = vadd.f32 %v1241, %v1351
    %v1353 = vpop.f32.mrf.mxu0
    %1354 = vmatprep.mubr.f32.mxu0 0.0
    %v1355 = vand.u32 %v841, 4294901760
    %v1356 = vsub.f32 %v841, %v1355
    %v1357 = vand.u32 %v1356, 4294901760
    %1358 = vmatmul.mubr.f32.gmra.mxu0 %v1357
    %v1359 = vpop.f32.mrf.mxu0
    %v1360 = vadd.f32 %v1248, %v1359
    %v1361 = vpop.f32.mrf.mxu0
    %1362 = vmatprep.mubr.f32.mxu0 0.0
    %v1363 = vand.u32 %v842, 4294901760
    %v1364 = vsub.f32 %v842, %v1363
    %v1365 = vand.u32 %v1364, 4294901760
    %1366 = vmatmul.mubr.f32.gmra.mxu0 %v1365
    %v1367 = vpop.f32.mrf.mxu0
    %v1368 = vadd.f32 %v1255, %v1367
    %v1369 = vpop.f32.mrf.mxu0
    %1370 = vdwg.mxu0
    %1371 = vmatprep.subr.mxu0 0.0
    %v1372 = vand.u32 %v155, 4294901760
    %v1373 = vsub.f32 %v155, %v1372
    %v1374 = vand.u32 %v1373, 4294901760
    %1375 = vmatpush1.msra.mxu0 %v1374
    %1376 = vmatprep.subr.mxu0 0.0
    %v1377 = vand.u32 %v154, 4294901760
    %v1378 = vsub.f32 %v154, %v1377
    %v1379 = vand.u32 %v1378, 4294901760
    %1380 = vmatpush1.msra.mxu0 %v1379
    %1381 = vmatprep.subr.mxu0 0.0
    %v1382 = vand.u32 %v153, 4294901760
    %v1383 = vsub.f32 %v153, %v1382
    %v1384 = vand.u32 %v1383, 4294901760
    %1385 = vmatpush1.msra.mxu0 %v1384
    %1386 = vmatprep.subr.mxu0 0.0
    %v1387 = vand.u32 %v152, 4294901760
    %v1388 = vsub.f32 %v152, %v1387
    %v1389 = vand.u32 %v1388, 4294901760
    %1390 = vmatpush1.msra.mxu0 %v1389
    %1391 = vmatprep.subr.mxu0 0.0
    %v1392 = vand.u32 %v151, 4294901760
    %v1393 = vsub.f32 %v151, %v1392
    %v1394 = vand.u32 %v1393, 4294901760
    %1395 = vmatpush1.msra.mxu0 %v1394
    %1396 = vmatprep.subr.mxu0 0.0
    %v1397 = vand.u32 %v150, 4294901760
    %v1398 = vsub.f32 %v150, %v1397
    %v1399 = vand.u32 %v1398, 4294901760
    %1400 = vmatpush1.msra.mxu0 %v1399
    %1401 = vmatprep.subr.mxu0 0.0
    %v1402 = vand.u32 %v149, 4294901760
    %v1403 = vsub.f32 %v149, %v1402
    %v1404 = vand.u32 %v1403, 4294901760
    %1405 = vmatpush1.msra.mxu0 %v1404
    %1406 = vmatprep.subr.mxu0 0.0
    %v1407 = vand.u32 %v148, 4294901760
    %v1408 = vsub.f32 %v148, %v1407
    %v1409 = vand.u32 %v1408, 4294901760
    %1410 = vmatpush1.msra.mxu0 %v1409
    %1411 = vmatprep.subr.mxu0 0.0
    %v1412 = vand.u32 %v147, 4294901760
    %v1413 = vsub.f32 %v147, %v1412
    %v1414 = vand.u32 %v1413, 4294901760
    %1415 = vmatpush1.msra.mxu0 %v1414
    %1416 = vmatprep.subr.mxu0 0.0
    %v1417 = vand.u32 %v146, 4294901760
    %v1418 = vsub.f32 %v146, %v1417
    %v1419 = vand.u32 %v1418, 4294901760
    %1420 = vmatpush1.msra.mxu0 %v1419
    %1421 = vmatprep.subr.mxu0 0.0
    %v1422 = vand.u32 %v145, 4294901760
    %v1423 = vsub.f32 %v145, %v1422
    %v1424 = vand.u32 %v1423, 4294901760
    %1425 = vmatpush1.msra.mxu0 %v1424
    %1426 = vmatprep.subr.mxu0 0.0
    %v1427 = vand.u32 %v144, 4294901760
    %v1428 = vsub.f32 %v144, %v1427
    %v1429 = vand.u32 %v1428, 4294901760
    %1430 = vmatpush1.msra.mxu0 %v1429
    %1431 = vmatprep.subr.mxu0 0.0
    %v1432 = vand.u32 %v143, 4294901760
    %v1433 = vsub.f32 %v143, %v1432
    %v1434 = vand.u32 %v1433, 4294901760
    %1435 = vmatpush1.msra.mxu0 %v1434
    %1436 = vmatprep.subr.mxu0 0.0
    %v1437 = vand.u32 %v142, 4294901760
    %v1438 = vsub.f32 %v142, %v1437
    %v1439 = vand.u32 %v1438, 4294901760
    %1440 = vmatpush1.msra.mxu0 %v1439
    %1441 = vmatprep.subr.mxu0 0.0
    %v1442 = vand.u32 %v141, 4294901760
    %v1443 = vsub.f32 %v141, %v1442
    %v1444 = vand.u32 %v1443, 4294901760
    %1445 = vmatpush1.msra.mxu0 %v1444
    %1446 = vmatprep.subr.mxu0 0.0
    %v1447 = vand.u32 %v140, 4294901760
    %v1448 = vsub.f32 %v140, %v1447
    %v1449 = vand.u32 %v1448, 4294901760
    %1450 = vmatpush1.msra.mxu0 %v1449
    %1451 = vmatprep.subr.mxu0 0.0
    %1452 = vmatpush2.msra.mxu0 0.0
    %1453 = vmatprep.subr.mxu0 0.0
    %1454 = vmatpush2.msra.mxu0 0.0
    %1455 = vmatprep.subr.mxu0 0.0
    %1456 = vmatpush2.msra.mxu0 0.0
    %1457 = vmatprep.subr.mxu0 0.0
    %1458 = vmatpush2.msra.mxu0 0.0
    %1459 = vmatprep.subr.mxu0 0.0
    %1460 = vmatpush2.msra.mxu0 0.0
    %1461 = vmatprep.subr.mxu0 0.0
    %1462 = vmatpush2.msra.mxu0 0.0
    %1463 = vmatprep.subr.mxu0 0.0
    %1464 = vmatpush2.msra.mxu0 0.0
    %1465 = vmatprep.subr.mxu0 0.0
    %1466 = vmatpush2.msra.mxu0 0.0
    %1467 = vmatprep.subr.mxu0 0.0
    %1468 = vmatpush2.msra.mxu0 0.0
    %1469 = vmatprep.subr.mxu0 0.0
    %1470 = vmatpush2.msra.mxu0 0.0
    %1471 = vmatprep.subr.mxu0 0.0
    %1472 = vmatpush2.msra.mxu0 0.0
    %1473 = vmatprep.subr.mxu0 0.0
    %1474 = vmatpush2.msra.mxu0 0.0
    %1475 = vmatprep.subr.mxu0 0.0
    %1476 = vmatpush2.msra.mxu0 0.0
    %1477 = vmatprep.subr.mxu0 0.0
    %1478 = vmatpush2.msra.mxu0 0.0
    %1479 = vmatprep.subr.mxu0 0.0
    %1480 = vmatpush2.msra.mxu0 0.0
    %1481 = vmatprep.subr.mxu0 0.0
    %1482 = vmatpush2.msra.mxu0 0.0
    %1483 = vmatprep.mubr.f32.mxu0 0.0
    %v1484 = vand.u32 %v839, 4294901760
    %1485 = vmatmul.mubr.f32.gmra.mxu0 %v1484
    %v1486 = vpop.f32.mrf.mxu0
    %v1487 = vadd.f32 %v1344, %v1486
    %v1488 = vpop.f32.mrf.mxu0
    %1489 = vmatprep.mubr.f32.mxu0 0.0
    %v1490 = vand.u32 %v840, 4294901760
    %1491 = vmatmul.mubr.f32.gmra.mxu0 %v1490
    %v1492 = vpop.f32.mrf.mxu0
    %v1493 = vadd.f32 %v1352, %v1492
    %v1494 = vpop.f32.mrf.mxu0
    %1495 = vmatprep.mubr.f32.mxu0 0.0
    %v1496 = vand.u32 %v841, 4294901760
    %1497 = vmatmul.mubr.f32.gmra.mxu0 %v1496
    %v1498 = vpop.f32.mrf.mxu0
    %v1499 = vadd.f32 %v1360, %v1498
    %v1500 = vpop.f32.mrf.mxu0
    %1501 = vmatprep.mubr.f32.mxu0 0.0
    %v1502 = vand.u32 %v842, 4294901760
    %1503 = vmatmul.mubr.f32.gmra.mxu0 %v1502
    %v1504 = vpop.f32.mrf.mxu0
    %v1505 = vadd.f32 %v1368, %v1504
    %v1506 = vpop.f32.mrf.mxu0
    %1507 = vdwg.mxu0
    %1508 = vmatprep.subr.mxu0 0.0
    %v1509 = vand.u32 %v155, 4294901760
    %1510 = vmatpush1.msra.mxu0 %v1509
    %1511 = vmatprep.subr.mxu0 0.0
    %v1512 = vand.u32 %v154, 4294901760
    %1513 = vmatpush1.msra.mxu0 %v1512
    %1514 = vmatprep.subr.mxu0 0.0
    %v1515 = vand.u32 %v153, 4294901760
    %1516 = vmatpush1.msra.mxu0 %v1515
    %1517 = vmatprep.subr.mxu0 0.0
    %v1518 = vand.u32 %v152, 4294901760
    %1519 = vmatpush1.msra.mxu0 %v1518
    %1520 = vmatprep.subr.mxu0 0.0
    %v1521 = vand.u32 %v151, 4294901760
    %1522 = vmatpush1.msra.mxu0 %v1521
    %1523 = vmatprep.subr.mxu0 0.0
    %v1524 = vand.u32 %v150, 4294901760
    %1525 = vmatpush1.msra.mxu0 %v1524
    %1526 = vmatprep.subr.mxu0 0.0
    %v1527 = vand.u32 %v149, 4294901760
    %1528 = vmatpush1.msra.mxu0 %v1527
    %1529 = vmatprep.subr.mxu0 0.0
    %v1530 = vand.u32 %v148, 4294901760
    %1531 = vmatpush1.msra.mxu0 %v1530
    %1532 = vmatprep.subr.mxu0 0.0
    %v1533 = vand.u32 %v147, 4294901760
    %1534 = vmatpush1.msra.mxu0 %v1533
    %1535 = vmatprep.subr.mxu0 0.0
    %v1536 = vand.u32 %v146, 4294901760
    %1537 = vmatpush1.msra.mxu0 %v1536
    %1538 = vmatprep.subr.mxu0 0.0
    %v1539 = vand.u32 %v145, 4294901760
    %1540 = vmatpush1.msra.mxu0 %v1539
    %1541 = vmatprep.subr.mxu0 0.0
    %v1542 = vand.u32 %v144, 4294901760
    %1543 = vmatpush1.msra.mxu0 %v1542
    %1544 = vmatprep.subr.mxu0 0.0
    %v1545 = vand.u32 %v143, 4294901760
    %1546 = vmatpush1.msra.mxu0 %v1545
    %1547 = vmatprep.subr.mxu0 0.0
    %v1548 = vand.u32 %v142, 4294901760
    %1549 = vmatpush1.msra.mxu0 %v1548
    %1550 = vmatprep.subr.mxu0 0.0
    %v1551 = vand.u32 %v141, 4294901760
    %1552 = vmatpush1.msra.mxu0 %v1551
    %1553 = vmatprep.subr.mxu0 0.0
    %v1554 = vand.u32 %v140, 4294901760
    %1555 = vmatpush1.msra.mxu0 %v1554
    %1556 = vmatprep.subr.mxu0 0.0
    %1557 = vmatpush2.msra.mxu0 0.0
    %1558 = vmatprep.subr.mxu0 0.0
    %1559 = vmatpush2.msra.mxu0 0.0
    %1560 = vmatprep.subr.mxu0 0.0
    %1561 = vmatpush2.msra.mxu0 0.0
    %1562 = vmatprep.subr.mxu0 0.0
    %1563 = vmatpush2.msra.mxu0 0.0
    %1564 = vmatprep.subr.mxu0 0.0
    %1565 = vmatpush2.msra.mxu0 0.0
    %1566 = vmatprep.subr.mxu0 0.0
    %1567 = vmatpush2.msra.mxu0 0.0
    %1568 = vmatprep.subr.mxu0 0.0
    %1569 = vmatpush2.msra.mxu0 0.0
    %1570 = vmatprep.subr.mxu0 0.0
    %1571 = vmatpush2.msra.mxu0 0.0
    %1572 = vmatprep.subr.mxu0 0.0
    %1573 = vmatpush2.msra.mxu0 0.0
    %1574 = vmatprep.subr.mxu0 0.0
    %1575 = vmatpush2.msra.mxu0 0.0
    %1576 = vmatprep.subr.mxu0 0.0
    %1577 = vmatpush2.msra.mxu0 0.0
    %1578 = vmatprep.subr.mxu0 0.0
    %1579 = vmatpush2.msra.mxu0 0.0
    %1580 = vmatprep.subr.mxu0 0.0
    %1581 = vmatpush2.msra.mxu0 0.0
    %1582 = vmatprep.subr.mxu0 0.0
    %1583 = vmatpush2.msra.mxu0 0.0
    %1584 = vmatprep.subr.mxu0 0.0
    %1585 = vmatpush2.msra.mxu0 0.0
    %1586 = vmatprep.subr.mxu0 0.0
    %1587 = vmatpush2.msra.mxu0 0.0
    %1588 = vmatprep.mubr.f32.mxu0 0.0
    %v1589 = vand.u32 %v839, 4294901760
    %1590 = vmatmul.mubr.f32.gmra.mxu0 %v1589
    %v1591 = vpop.f32.mrf.mxu0
    %v1592 = vadd.f32 %v1487, %v1591
    %v1593 = vpop.f32.mrf.mxu0
    %1594 = vmatprep.mubr.f32.mxu0 0.0
    %v1595 = vand.u32 %v840, 4294901760
    %1596 = vmatmul.mubr.f32.gmra.mxu0 %v1595
    %v1597 = vpop.f32.mrf.mxu0
    %v1598 = vadd.f32 %v1493, %v1597
    %v1599 = vpop.f32.mrf.mxu0
    %1600 = vmatprep.mubr.f32.mxu0 0.0
    %v1601 = vand.u32 %v841, 4294901760
    %1602 = vmatmul.mubr.f32.gmra.mxu0 %v1601
    %v1603 = vpop.f32.mrf.mxu0
    %v1604 = vadd.f32 %v1499, %v1603
    %v1605 = vpop.f32.mrf.mxu0
    %1606 = vmatprep.mubr.f32.mxu0 0.0
    %v1607 = vand.u32 %v842, 4294901760
    %1608 = vmatmul.mubr.f32.gmra.mxu0 %v1607
    %v1609 = vpop.f32.mrf.mxu0
    %v1610 = vadd.f32 %v1505, %v1609
    %v1611 = vpop.f32.mrf.mxu0
    %1612 = vdwg.mxu0
    %v1613 = vmul.f32 %v818, %v1592
    %v1614 = vmul.f32 %v824, %v1598
    %v1615 = vmul.f32 %v830, %v1604
    %v1616 = vmul.f32 %v836, %v1610
    %v1617 = vadd.f32 %v1613, %v1614
    %v1618 = vadd.f32 %v1617, %v1615
    %v1619 = vadd.f32 %v1618, %v1616
    %v1620 = vrot.slane %v1619, 4
    %v1621 = vadd.f32 %v1619, %v1620
    %v1622 = vrot.slane %v1621, 2
    %v1623 = vadd.f32 %v1621, %v1622
    %v1624 = vrot.slane %v1623, 1
    %v1625 = vadd.f32 %v1623, %v1624
    %v1626 = vsub.f32 0.0, %v1625
    %v1627 = vmul.f32 %v1626, 1.442695
    %v1628 = vpow.pop %v1627
    %v1629 = vadd.f32 %v1628, 1.0
    %v1630 = vrcp.pop %v1629
    %v1631 = vmul.f32 1.0, %v1630
    %1632 = vst [vmem:[#allocation8] sm:$0x1] %v1631
    // Predicated region
    $region30: #{tpu_custom_call.1} parent=1 // pred_check
      _
    $region31: #{tpu_custom_call.1} parent=1 // pred_check_branch
      %1634 = sbr.rel (0) target = $region33
    $region32: #{tpu_custom_call.1} parent=1 // pred_region
      %s1636 = ssub.s32 16, 16
      %1637 = vsyncadd [#allocation4], %s1636
      %s1639 = sshll.u32 [#allocation8], 4
      %s1640 = int_to_ptr.vmem [resolvable:$true] %s1639
      %1642 = dma.vmem_to_hbm [thread:$0]  %s1640, 16, %s4, [#allocation4]
    $region33: #{tpu_custom_call.1} parent=1 // pred_fallthru
      _
    // Predicated region
    $region34: #{tpu_custom_call.1} parent=1 // pred_check
      _
    $region35: #{tpu_custom_call.1} parent=1 // pred_check_branch
      %1644 = sbr.rel (0) target = $region37
    $region36: #{tpu_custom_call.1} parent=1 // pred_region
      %1645 = dma.done [#allocation4], 16
    $region37: #{tpu_custom_call.1} parent=1 // pred_fallthru
      _
    %1646 = vsyncpa [#allocation3], 1
    %1647 = vsyncpa [#allocation6], 1
    %1648 = vsyncpa [#allocation4], 1

</llo_original>
